<compile_context>
chip_gen: v7x
topology: tpu7x:2x2x1
jax: 0.10.0
libtpu: 0.0.40
codegen_flags: <defaults>
</compile_context>

<pallas_src>
import functools
import math

import jax
import jax.numpy as jnp
from jax.experimental import pallas as pl
from jax.experimental.pallas import tpu as pltpu
import numpy as np

# Scoped VMEM budget: 48 MiB is safe on v7x (64 MiB physical); raise toward
# ~100 MiB on v5e/v6e (128 MiB physical) when using very large tiles.
_VMEM_LIMIT_BYTES = 48 * 1024 * 1024


# ---------------------------------------------------------------------------
# Tiled linear (c_attn / c_proj): bf16 MXU operands, fp32 accumulator
# ---------------------------------------------------------------------------
def _pick_tile(dim, prefs=(512, 256, 128)):
    # 256-multiples feed the v6e/v7x 256-wide MXU; 128 suffices on v5e.
    # Small dims use the full extent (still satisfies the (8,128) rule).
    if dim <= prefs[0]:
        return dim
    for p in prefs:
        if dim % p == 0:
            return p
    return dim  # TODO(synk): pad ragged large dims instead of full-extent.


def _linear_kernel(x_ref, w_ref, b_ref, o_ref, acc_ref):
    @pl.when(pl.program_id(2) == 0)
    def _():
        acc_ref[...] = jnp.zeros_like(acc_ref[...])

    # bf16 operands unlock the native MXU path; accumulate in fp32.
    acc_ref[...] += jnp.dot(x_ref[...].astype(jnp.bfloat16),
                            w_ref[...].astype(jnp.bfloat16),
                            preferred_element_type=jnp.float32)

    @pl.when(pl.program_id(2) == pl.num_programs(2) - 1)
    def _():
        o_ref[...] = (acc_ref[...] + b_ref[...]).astype(o_ref.dtype)


def linear(x, w, b, *, out_dtype=None):
    """x: (M, K), w: (K, N), b: (N,) -> (M, N) = x @ w + b."""
    M, K = x.shape
    K2, N = w.shape
    assert K2 == K
    out_dtype = x.dtype if out_dtype is None else out_dtype
    tm = _pick_tile(M)
    tn = _pick_tile(N)
    tk = _pick_tile(K)
    return pl.pallas_call(
        _linear_kernel,
        out_shape=jax.ShapeDtypeStruct((M, N), out_dtype),
        grid=(M // tm, N // tn, K // tk),
        in_specs=[
            pl.BlockSpec((tm, tk), lambda i, j, k: (i, k)),
            pl.BlockSpec((tk, tn), lambda i, j, k: (k, j)),
            pl.BlockSpec((1, tn), lambda i, j, k: (0, j)),
        ],
        out_specs=pl.BlockSpec((tm, tn), lambda i, j, k: (i, j)),
        scratch_shapes=[pltpu.VMEM((tm, tn), jnp.float32)],
        compiler_params=pltpu.CompilerParams(
            dimension_semantics=("parallel", "parallel", "arbitrary"),
            vmem_limit_bytes=_VMEM_LIMIT_BYTES,
        ),
    )(x, w, b.astype(jnp.float32).reshape(1, N))


# ---------------------------------------------------------------------------
# Rotary tables (pure numpy, cached host-side; sign folded into sinA / sinB)
# ---------------------------------------------------------------------------
@functools.lru_cache(maxsize=None)
def _rope_tables_np(seq_len, head_dim, base=10000.0):
    """Returns numpy (cos, sin, sin_a, sin_b), each (T, D).

    rotate_every_two(x)*sin == roll(x,-1)*sin_a + roll(x,+1)*sin_b with
      sin_a[j] = -sin[j] for even j else 0,
      sin_b[j] =  sin[j] for odd  j else 0,
    and the roll wraparound lanes always hit a zero multiplier.
    """
    inv_freq = 1.0 / (base ** (np.arange(0, head_dim, 2, dtype=np.float32)
                               / head_dim))
    t = np.arange(seq_len, dtype=np.float32)
    freqs = np.einsum('i,j->ij', t, inv_freq)            # (T, D/2)
    emb = np.repeat(freqs, 2, axis=-1)                    # 'b n -> b (n j)', j=2
    cos = np.cos(emb).astype(np.float32)
    sin = np.sin(emb).astype(np.float32)
    even = (np.arange(head_dim) % 2 == 0)
    sin_a = np.where(even, -sin, 0.0).astype(np.float32)
    sin_b = np.where(even, 0.0, sin).astype(np.float32)
    return cos, sin, sin_a, sin_b


def _apply_rope(x, cos, sin_a, sin_b):
    # TODO(synk): pltpu.roll would put the rotate on the XLU slot on hardware;
    # jnp.roll (lane slices + concat) is used for portability at small D.
    return (x * cos
            + jnp.roll(x, -1, axis=-1) * sin_a
            + jnp.roll(x, 1, axis=-1) * sin_b)


# ---------------------------------------------------------------------------
# Flash-style RoPE attention: grid = (B, H, Tq tiles, Tk tiles)
# ---------------------------------------------------------------------------
def _flash_attn_kernel(q_ref, k_ref, v_ref,
                       cos_q_ref, sa_q_ref, sb_q_ref,
                       cos_k_ref, sa_k_ref, sb_k_ref,
                       o_ref, m_sc, l_sc, acc_sc, *, causal):
    tq, D = q_ref.shape[2], q_ref.shape[3]
    tk = k_ref.shape[2]
    qi = pl.program_id(2)
    ki = pl.program_id(3)

    @pl.when(ki == 0)
    def _():
        m_sc[...] = jnp.full_like(m_sc[...], -jnp.inf)
        l_sc[...] = jnp.zeros_like(l_sc[...])
        acc_sc[...] = jnp.zeros_like(acc_sc[...])

    def compute():
        # RoPE in fp32 with folded-sign tables; softmax scale folded into q.
        q = _apply_rope(q_ref[0, 0].astype(jnp.float32),
                        cos_q_ref[...], sa_q_ref[...], sb_q_ref[...])
        k = _apply_rope(k_ref[0, 0].astype(jnp.float32),
                        cos_k_ref[...], sa_k_ref[...], sb_k_ref[...])
        q = q * (1.0 / math.sqrt(D))

        # bf16 MXU operands, fp32 accumulation.
        s = jax.lax.dot_general(q.astype(jnp.bfloat16), k.astype(jnp.bfloat16),
                                (((1,), (1,)), ((), ())),
                                preferred_element_type=jnp.float32)  # (tq, tk)
        if causal:
            row = qi * tq + jax.lax.broadcasted_iota(jnp.int32, (tq, tk), 0)
            col = ki * tk + jax.lax.broadcasted_iota(jnp.int32, (tq, tk), 1)
            s = jnp.where(col <= row, s, -1e30)   # fp32 mask before exp

        m_prev = m_sc[...]                                   # (tq, 1)
        m_new = jnp.maximum(m_prev, jnp.max(s, axis=-1, keepdims=True))
        alpha = jnp.exp(m_prev - m_new)
        p = jnp.exp(s - m_new)
        l_sc[...] = alpha * l_sc[...] + jnp.sum(p, axis=-1, keepdims=True)
        pv = jnp.dot(p.astype(jnp.bfloat16), v_ref[0, 0],
                     preferred_element_type=jnp.float32)     # (tq, D)
        acc_sc[...] = alpha * acc_sc[...] + pv
        m_sc[...] = m_new

    if causal:
        # Skip KV tiles that lie entirely above the causal diagonal.
        pl.when(ki * tk <= qi * tq + (tq - 1))(compute)
    else:
        compute()

    @pl.when(ki == pl.num_programs(3) - 1)
    def _():
        # Exact normalization (review: avoid approx reciprocal here).
        o_ref[0, 0] = (acc_sc[...] / l_sc[...]).astype(o_ref.dtype)


def _pick_seq_tile(T):
    for t in (512, 256, 128):
        if T % t == 0:
            return t
    return T  # whole sequence per tile for small / ragged T (demo shapes)


def rope_flash_attention(q, k, v, cos, sin_a, sin_b, *, causal):
    """q/k/v: (B, H, T, D) (bf16). cos/sin_a/sin_b: (T, D) fp32 -> (B,H,T,D)."""
    B, H, T, D = q.shape
    tq = _pick_seq_tile(T)
    tk = _pick_seq_tile(T)
    kernel = functools.partial(_flash_attn_kernel, causal=causal)

    q_map = lambda b, h, qi, ki: (b, h, qi, 0)
    kv_map = lambda b, h, qi, ki: (b, h, ki, 0)
    tq_map = lambda b, h, qi, ki: (qi, 0)
    tk_map = lambda b, h, qi, ki: (ki, 0)

    return pl.pallas_call(
        kernel,
        out_shape=jax.ShapeDtypeStruct((B, H, T, D), q.dtype),
        grid=(B, H, T // tq, T // tk),
        in_specs=[
            pl.BlockSpec((1, 1, tq, D), q_map),
            pl.BlockSpec((1, 1, tk, D), kv_map),
            pl.BlockSpec((1, 1, tk, D), kv_map),
            pl.BlockSpec((tq, D), tq_map),
            pl.BlockSpec((tq, D), tq_map),
            pl.BlockSpec((tq, D), tq_map),
            pl.BlockSpec((tk, D), tk_map),
            pl.BlockSpec((tk, D), tk_map),
            pl.BlockSpec((tk, D), tk_map),
        ],
        out_specs=pl.BlockSpec((1, 1, tq, D), q_map),
        scratch_shapes=[
            pltpu.VMEM((tq, 1), jnp.float32),   # m (running max)
            pltpu.VMEM((tq, 1), jnp.float32),   # l (running denom)
            pltpu.VMEM((tq, D), jnp.float32),   # acc
        ],
        compiler_params=pltpu.CompilerParams(
            dimension_semantics=("parallel", "parallel", "parallel", "arbitrary"),
            vmem_limit_bytes=_VMEM_LIMIT_BYTES,
        ),
    )(q, k, v, cos, sin_a, sin_b, cos, sin_a, sin_b)


# ---------------------------------------------------------------------------
# Parameters + forward (eval mode)
# ---------------------------------------------------------------------------
def init_params(key, n_embd):
    ks = jax.random.split(key, 4)
    s = 0.02
    return {
        'w_attn': s * jax.random.normal(ks[0], (n_embd, 3 * n_embd), jnp.float32),
        'b_attn': s * jax.random.normal(ks[1], (3 * n_embd,), jnp.float32),
        'w_proj': s * jax.random.normal(ks[2], (n_embd, n_embd), jnp.float32),
        'b_proj': s * jax.random.normal(ks[3], (n_embd,), jnp.float32),
    }


def rope_self_attention(x, params, *, n_head, causal):
    """Pallas implementation of ROPESelfAttention.forward (eval mode)."""
    B, T, C = x.shape
    D = C // n_head

    # c_attn: bf16 qkv intermediate halves HBM traffic into the attention kernel.
    qkv = linear(x.reshape(B * T, C), params['w_attn'], params['b_attn'],
                 out_dtype=jnp.bfloat16)
    qkv = qkv.reshape(B, T, 3, n_head, D)
    q = jnp.transpose(qkv[:, :, 0], (0, 2, 1, 3))   # (B, H, T, D), lane-aligned heads
    k = jnp.transpose(qkv[:, :, 1], (0, 2, 1, 3))
    v = jnp.transpose(qkv[:, :, 2], (0, 2, 1, 3))

    cos, _, sin_a, sin_b = _rope_tables_np(T, D)     # numpy -> no tracer leak
    y = rope_flash_attention(q, k, v,
                             jnp.asarray(cos), jnp.asarray(sin_a),
                             jnp.asarray(sin_b), causal=causal)

    y = jnp.transpose(y, (0, 2, 1, 3)).reshape(B * T, C)
    y = linear(y, params['w_proj'], params['b_proj'], out_dtype=jnp.float32)
    return y.reshape(B, T, C)


# ---------------------------------------------------------------------------
# Pure-JAX fp32 reference (mirrors the PyTorch forward exactly)
# ---------------------------------------------------------------------------
def reference(x, params, n_head, causal):
    B, T, C = x.shape
    D = C // n_head
    qkv = x @ params['w_attn'] + params['b_attn']
    q, k, v = qkv[..., :C], qkv[..., C:2 * C], qkv[..., 2 * C:]
    q = q.reshape(B, T, n_head, D).transpose(0, 2, 1, 3)
    k = k.reshape(B, T, n_head, D).transpose(0, 2, 1, 3)
    v = v.reshape(B, T, n_head, D).transpose(0, 2, 1, 3)

    cos_np, sin_np, _, _ = _rope_tables_np(T, D)
    cos, sin = jnp.asarray(cos_np), jnp.asarray(sin_np)

    def rot(z):
        z1, z2 = z[..., ::2], z[..., 1::2]
        return jnp.stack((-z2, z1), axis=-1).reshape(z.shape)

    q = q * cos + rot(q) * sin
    k = k * cos + rot(k) * sin
    att = jnp.einsum('bhtd,bhsd->bhts', q, k) / math.sqrt(D)
    if causal:
        mask = jnp.tril(jnp.ones((T, T), dtype=bool))
        att = jnp.where(mask, att, -jnp.inf)
    att = jax.nn.softmax(att, axis=-1)
    y = jnp.einsum('bhts,bhsd->bhtd', att, v)
    y = y.transpose(0, 2, 1, 3).reshape(B, T, C)
    return y @ params['w_proj'] + params['b_proj']


# ---------------------------------------------------------------------------
if __name__ == "__main__":
    B, T = 2, 8
    n_embd, n_head = 32, 4      # head_dim = 8

    key = jax.random.PRNGKey(0)
    kx, kp = jax.random.split(key, 2)
    x = jax.random.normal(kx, (B, T, n_embd), jnp.float32)
    params = init_params(kp, n_embd)

    fwd = jax.jit(rope_self_attention, static_argnames=("n_head", "causal"))

    for causal in (False, True):
        out = jax.block_until_ready(fwd(x, params, n_head=n_head, causal=causal))
        ref = jax.block_until_ready(reference(x, params, n_head, causal))
        # Tolerances account for bf16 MXU operands / bf16 inter-kernel tensors.
        np.testing.assert_allclose(np.asarray(out), np.asarray(ref),
                                   rtol=3e-2, atol=2e-3)
    print("KERNEL_OK")
</pallas_src>

<mosaic_0001>
module attributes {stable_mosaic.version = 11 : i64} {
  func.func @_linear_kernel(%arg0: i32, %arg1: i32, %arg2: i32, %arg3: memref<16x32xf32, #tpu.memory_space<vmem>>, %arg4: memref<32x96xf32, #tpu.memory_space<vmem>>, %arg5: memref<1x96xf32, #tpu.memory_space<vmem>>, %arg6: memref<16x96xbf16, #tpu.memory_space<vmem>>, %arg7: memref<16x96xf32, #tpu.memory_space<vmem>>) attributes {dimension_semantics = [#tpu.dimension_semantics<parallel>, #tpu.dimension_semantics<parallel>, #tpu.dimension_semantics<arbitrary>], iteration_bounds = array<i64: 1, 1, 1>, scalar_prefetch = 0 : i64, scratch_operands = 1 : i64, tpu.core_type = #tpu.core_type<tc>, window_params = [{transform_indices = @transform_0, window_bounds = array<i64: 16, 32>}, {transform_indices = @transform_1, window_bounds = array<i64: 32, 96>}, {transform_indices = @transform_2, window_bounds = array<i64: 1, 96>}, {transform_indices = @transform_3, window_bounds = array<i64: 16, 96>}]} {
    %c0_i32 = arith.constant 0 : i32
    %0 = arith.cmpi eq, %arg2, %c0_i32 : i32
    %1 = arith.extui %0 : i1 to i32
    %c0_i32_0 = arith.constant 0 : i32
    %2 = arith.cmpi ne, %1, %c0_i32_0 : i32
    scf.if %2 {
      %cst_10 = arith.constant 0.000000e+00 : f32
      %14 = vector.broadcast %cst_10 : f32 to vector<16x96xf32>
      %c0_11 = arith.constant 0 : index
      %c0_12 = arith.constant 0 : index
      %15 = vector.load %arg7[%c0_11, %c0_12] : memref<16x96xf32, #tpu.memory_space<vmem>>, vector<16x96xf32>
      tpu.vector_store %arg7[%c0_11, %c0_12], %14 {strides = array<i32>} : memref<16x96xf32, #tpu.memory_space<vmem>>, vector<16x96xf32>,
    } else {
    }
    %c0 = arith.constant 0 : index
    %c0_1 = arith.constant 0 : index
    %3 = vector.load %arg7[%c0, %c0_1] : memref<16x96xf32, #tpu.memory_space<vmem>>, vector<16x96xf32>
    %c0_2 = arith.constant 0 : index
    %c0_3 = arith.constant 0 : index
    %4 = vector.load %arg3[%c0_2, %c0_3] : memref<16x32xf32, #tpu.memory_space<vmem>>, vector<16x32xf32>
    %5 = arith.truncf %4 : vector<16x32xf32> to vector<16x32xbf16>
    %c0_4 = arith.constant 0 : index
    %c0_5 = arith.constant 0 : index
    %6 = vector.load %arg4[%c0_4, %c0_5] : memref<32x96xf32, #tpu.memory_space<vmem>>, vector<32x96xf32>
    %7 = arith.truncf %6 : vector<32x96xf32> to vector<32x96xbf16>
    %cst = arith.constant dense<0.000000e+00> : vector<16x96xf32>
    %8 = tpu.matmul %5, %7, %cst {dimension_numbers = #tpu.dot_dimension_numbers<[1], [0], [0], [1], [0, 0, 1, 1], [], []>} : vector<16x32xbf16>, vector<32x96xbf16>, vector<16x96xf32> -> vector<16x96xf32>
    %9 = arith.addf %3, %8 : vector<16x96xf32>
    %c0_6 = arith.constant 0 : index
    %c0_7 = arith.constant 0 : index
    %10 = vector.load %arg7[%c0_6, %c0_7] : memref<16x96xf32, #tpu.memory_space<vmem>>, vector<16x96xf32>
    tpu.vector_store %arg7[%c0_6, %c0_7], %9 {strides = array<i32>} : memref<16x96xf32, #tpu.memory_space<vmem>>, vector<16x96xf32>,
    %c0_i32_8 = arith.constant 0 : i32
    %11 = arith.cmpi eq, %arg2, %c0_i32_8 : i32
    %12 = arith.extui %11 : i1 to i32
    %c0_i32_9 = arith.constant 0 : i32
    %13 = arith.cmpi ne, %12, %c0_i32_9 : i32
    scf.if %13 {
      %c0_10 = arith.constant 0 : index
      %c0_11 = arith.constant 0 : index
      %14 = vector.load %arg7[%c0_10, %c0_11] : memref<16x96xf32, #tpu.memory_space<vmem>>, vector<16x96xf32>
      %c0_12 = arith.constant 0 : index
      %c0_13 = arith.constant 0 : index
      %15 = vector.load %arg5[%c0_12, %c0_13] : memref<1x96xf32, #tpu.memory_space<vmem>>, vector<1x96xf32>
      %16 = vector.broadcast %15 : vector<1x96xf32> to vector<16x96xf32>
      %17 = arith.addf %14, %16 : vector<16x96xf32>
      %18 = arith.truncf %17 : vector<16x96xf32> to vector<16x96xbf16>
      %c0_14 = arith.constant 0 : index
      %c0_15 = arith.constant 0 : index
      %19 = vector.load %arg6[%c0_14, %c0_15] : memref<16x96xbf16, #tpu.memory_space<vmem>>, vector<16x96xbf16>
      tpu.vector_store %arg6[%c0_14, %c0_15], %18 {strides = array<i32>} : memref<16x96xbf16, #tpu.memory_space<vmem>>, vector<16x96xbf16>,
    } else {
    }
    return
  }
  func.func @transform_0(%arg0: i32, %arg1: i32, %arg2: i32) -> (i32, i32) {
    %c0_i32 = arith.constant 0 : i32
    return %arg0, %arg2 : i32, i32
  }
  func.func @transform_1(%arg0: i32, %arg1: i32, %arg2: i32) -> (i32, i32) {
    %c0_i32 = arith.constant 0 : i32
    return %arg2, %arg1 : i32, i32
  }
  func.func @transform_2(%arg0: i32, %arg1: i32, %arg2: i32) -> (i32, i32) {
    %c0_i32 = arith.constant 0 : i32
    %c0_i32_0 = arith.constant 0 : i32
    return %c0_i32, %arg1 : i32, i32
  }
  func.func @transform_3(%arg0: i32, %arg1: i32, %arg2: i32) -> (i32, i32) {
    %c0_i32 = arith.constant 0 : i32
    return %arg0, %arg1 : i32, i32
  }
}

module attributes {stable_mosaic.version = 11 : i64} {
  func.func @_flash_attn_kernel(%arg0: i32, %arg1: i32, %arg2: i32, %arg3: i32, %arg4: memref<1x1x8x8xbf16, #tpu.memory_space<vmem>>, %arg5: memref<1x1x8x8xbf16, #tpu.memory_space<vmem>>, %arg6: memref<1x1x8x8xbf16, #tpu.memory_space<vmem>>, %arg7: memref<8x8xf32, #tpu.memory_space<vmem>>, %arg8: memref<8x8xf32, #tpu.memory_space<vmem>>, %arg9: memref<8x8xf32, #tpu.memory_space<vmem>>, %arg10: memref<8x8xf32, #tpu.memory_space<vmem>>, %arg11: memref<8x8xf32, #tpu.memory_space<vmem>>, %arg12: memref<8x8xf32, #tpu.memory_space<vmem>>, %arg13: memref<1x1x8x8xbf16, #tpu.memory_space<vmem>>, %arg14: memref<8x1xf32, #tpu.memory_space<vmem>>, %arg15: memref<8x1xf32, #tpu.memory_space<vmem>>, %arg16: memref<8x8xf32, #tpu.memory_space<vmem>>) attributes {dimension_semantics = [#tpu.dimension_semantics<parallel>, #tpu.dimension_semantics<parallel>, #tpu.dimension_semantics<parallel>, #tpu.dimension_semantics<arbitrary>], iteration_bounds = array<i64: 2, 4, 1, 1>, scalar_prefetch = 0 : i64, scratch_operands = 3 : i64, tpu.core_type = #tpu.core_type<tc>, window_params = [{transform_indices = @transform_0, window_bounds = array<i64: 1, 1, 8, 8>}, {transform_indices = @transform_1, window_bounds = array<i64: 1, 1, 8, 8>}, {transform_indices = @transform_2, window_bounds = array<i64: 1, 1, 8, 8>}, {transform_indices = @transform_3, window_bounds = array<i64: 8, 8>}, {transform_indices = @transform_4, window_bounds = array<i64: 8, 8>}, {transform_indices = @transform_5, window_bounds = array<i64: 8, 8>}, {transform_indices = @transform_6, window_bounds = array<i64: 8, 8>}, {transform_indices = @transform_7, window_bounds = array<i64: 8, 8>}, {transform_indices = @transform_8, window_bounds = array<i64: 8, 8>}, {transform_indices = @transform_9, window_bounds = array<i64: 1, 1, 8, 8>}]} {
    %c0_i32 = arith.constant 0 : i32
    %0 = arith.cmpi eq, %arg3, %c0_i32 : i32
    %1 = arith.extui %0 : i1 to i32
    %c0_i32_0 = arith.constant 0 : i32
    %2 = arith.cmpi ne, %1, %c0_i32_0 : i32
    scf.if %2 {
      %cst_42 = arith.constant 0xFF800000 : f32
      %70 = vector.broadcast %cst_42 : f32 to vector<8x1xf32>
      %c0_43 = arith.constant 0 : index
      %c0_44 = arith.constant 0 : index
      %71 = vector.load %arg14[%c0_43, %c0_44] : memref<8x1xf32, #tpu.memory_space<vmem>>, vector<8x1xf32>
      tpu.vector_store %arg14[%c0_43, %c0_44], %70 {strides = array<i32>} : memref<8x1xf32, #tpu.memory_space<vmem>>, vector<8x1xf32>,
      %cst_45 = arith.constant 0.000000e+00 : f32
      %72 = vector.broadcast %cst_45 : f32 to vector<8x1xf32>
      %c0_46 = arith.constant 0 : index
      %c0_47 = arith.constant 0 : index
      %73 = vector.load %arg15[%c0_46, %c0_47] : memref<8x1xf32, #tpu.memory_space<vmem>>, vector<8x1xf32>
      tpu.vector_store %arg15[%c0_46, %c0_47], %72 {strides = array<i32>} : memref<8x1xf32, #tpu.memory_space<vmem>>, vector<8x1xf32>,
      %cst_48 = arith.constant 0.000000e+00 : f32
      %74 = vector.broadcast %cst_48 : f32 to vector<8x8xf32>
      %c0_49 = arith.constant 0 : index
      %c0_50 = arith.constant 0 : index
      %75 = vector.load %arg16[%c0_49, %c0_50] : memref<8x8xf32, #tpu.memory_space<vmem>>, vector<8x8xf32>
      tpu.vector_store %arg16[%c0_49, %c0_50], %74 {strides = array<i32>} : memref<8x8xf32, #tpu.memory_space<vmem>>, vector<8x8xf32>,
    } else {
    }
    %c0 = arith.constant 0 : index
    %c0_1 = arith.constant 0 : index
    %c0_2 = arith.constant 0 : index
    %c0_3 = arith.constant 0 : index
    %3 = vector.load %arg4[%c0, %c0_1, %c0_2, %c0_3] : memref<1x1x8x8xbf16, #tpu.memory_space<vmem>>, vector<1x1x8x8xbf16>
    %4 = vector.shape_cast %3 : vector<1x1x8x8xbf16> to vector<8x8xbf16>
    %5 = arith.extf %4 : vector<8x8xbf16> to vector<8x8xf32>
    %c0_4 = arith.constant 0 : index
    %c0_5 = arith.constant 0 : index
    %6 = vector.load %arg7[%c0_4, %c0_5] : memref<8x8xf32, #tpu.memory_space<vmem>>, vector<8x8xf32>
    %c0_6 = arith.constant 0 : index
    %c0_7 = arith.constant 0 : index
    %7 = vector.load %arg8[%c0_6, %c0_7] : memref<8x8xf32, #tpu.memory_space<vmem>>, vector<8x8xf32>
    %c0_8 = arith.constant 0 : index
    %c0_9 = arith.constant 0 : index
    %8 = vector.load %arg9[%c0_8, %c0_9] : memref<8x8xf32, #tpu.memory_space<vmem>>, vector<8x8xf32>
    %9 = arith.mulf %5, %6 : vector<8x8xf32>
    %10 = vector.extract_strided_slice %5 {offsets = [0, 1], sizes = [8, 7], strides = [1, 1]} : vector<8x8xf32> to vector<8x7xf32>
    %11 = vector.extract_strided_slice %5 {offsets = [0, 0], sizes = [8, 1], strides = [1, 1]} : vector<8x8xf32> to vector<8x1xf32>
    %12 = tpu.concatenate %10, %11 in 1 : vector<8x7xf32>, vector<8x1xf32> -> vector<8x8xf32>
    %13 = arith.mulf %12, %7 : vector<8x8xf32>
    %14 = arith.addf %9, %13 : vector<8x8xf32>
    %15 = vector.extract_strided_slice %5 {offsets = [0, 7], sizes = [8, 1], strides = [1, 1]} : vector<8x8xf32> to vector<8x1xf32>
    %16 = vector.extract_strided_slice %5 {offsets = [0, 0], sizes = [8, 7], strides = [1, 1]} : vector<8x8xf32> to vector<8x7xf32>
    %17 = tpu.concatenate %15, %16 in 1 : vector<8x1xf32>, vector<8x7xf32> -> vector<8x8xf32>
    %18 = arith.mulf %17, %8 : vector<8x8xf32>
    %19 = arith.addf %14, %18 : vector<8x8xf32>
    %c0_10 = arith.constant 0 : index
    %c0_11 = arith.constant 0 : index
    %c0_12 = arith.constant 0 : index
    %c0_13 = arith.constant 0 : index
    %20 = vector.load %arg5[%c0_10, %c0_11, %c0_12, %c0_13] : memref<1x1x8x8xbf16, #tpu.memory_space<vmem>>, vector<1x1x8x8xbf16>
    %21 = vector.shape_cast %20 : vector<1x1x8x8xbf16> to vector<8x8xbf16>
    %22 = arith.extf %21 : vector<8x8xbf16> to vector<8x8xf32>
    %c0_14 = arith.constant 0 : index
    %c0_15 = arith.constant 0 : index
    %23 = vector.load %arg10[%c0_14, %c0_15] : memref<8x8xf32, #tpu.memory_space<vmem>>, vector<8x8xf32>
    %c0_16 = arith.constant 0 : index
    %c0_17 = arith.constant 0 : index
    %24 = vector.load %arg11[%c0_16, %c0_17] : memref<8x8xf32, #tpu.memory_space<vmem>>, vector<8x8xf32>
    %c0_18 = arith.constant 0 : index
    %c0_19 = arith.constant 0 : index
    %25 = vector.load %arg12[%c0_18, %c0_19] : memref<8x8xf32, #tpu.memory_space<vmem>>, vector<8x8xf32>
    %26 = arith.mulf %22, %23 : vector<8x8xf32>
    %27 = vector.extract_strided_slice %22 {offsets = [0, 1], sizes = [8, 7], strides = [1, 1]} : vector<8x8xf32> to vector<8x7xf32>
    %28 = vector.extract_strided_slice %22 {offsets = [0, 0], sizes = [8, 1], strides = [1, 1]} : vector<8x8xf32> to vector<8x1xf32>
    %29 = tpu.concatenate %27, %28 in 1 : vector<8x7xf32>, vector<8x1xf32> -> vector<8x8xf32>
    %30 = arith.mulf %29, %24 : vector<8x8xf32>
    %31 = arith.addf %26, %30 : vector<8x8xf32>
    %32 = vector.extract_strided_slice %22 {offsets = [0, 7], sizes = [8, 1], strides = [1, 1]} : vector<8x8xf32> to vector<8x1xf32>
    %33 = vector.extract_strided_slice %22 {offsets = [0, 0], sizes = [8, 7], strides = [1, 1]} : vector<8x8xf32> to vector<8x7xf32>
    %34 = tpu.concatenate %32, %33 in 1 : vector<8x1xf32>, vector<8x7xf32> -> vector<8x8xf32>
    %35 = arith.mulf %34, %25 : vector<8x8xf32>
    %36 = arith.addf %31, %35 : vector<8x8xf32>
    %cst = arith.constant 0.353553385 : f32
    %37 = vector.broadcast %cst : f32 to vector<8x8xf32>
    %38 = arith.mulf %19, %37 : vector<8x8xf32>
    %39 = arith.truncf %38 : vector<8x8xf32> to vector<8x8xbf16>
    %40 = arith.truncf %36 : vector<8x8xf32> to vector<8x8xbf16>
    %cst_20 = arith.constant dense<0.000000e+00> : vector<8x8xf32>
    %41 = tpu.matmul %39, %40, %cst_20 {dimension_numbers = #tpu.dot_dimension_numbers<[1], [1], [0], [0], [0, 0, 1, 0], [], []>} : vector<8x8xbf16>, vector<8x8xbf16>, vector<8x8xf32> -> vector<8x8xf32>
    %c0_21 = arith.constant 0 : index
    %c0_22 = arith.constant 0 : index
    %42 = vector.load %arg14[%c0_21, %c0_22] : memref<8x1xf32, #tpu.memory_space<vmem>>, vector<8x1xf32>
    %cst_23 = arith.constant dense<0xFF800000> : vector<8xf32>
    %43 = vector.multi_reduction <maximumf>, %41, %cst_23 [1] : vector<8x8xf32> to vector<8xf32>
    %44 = vector.shape_cast %43 : vector<8xf32> to vector<8x1xf32>
    %45 = arith.maximumf %42, %44 : vector<8x1xf32>
    %46 = arith.subf %42, %45 : vector<8x1xf32>
    %47 = math.exp %46 : vector<8x1xf32>
    %48 = vector.broadcast %45 : vector<8x1xf32> to vector<8x8xf32>
    %49 = arith.subf %41, %48 : vector<8x8xf32>
    %50 = math.exp %49 : vector<8x8xf32>
    %c0_24 = arith.constant 0 : index
    %c0_25 = arith.constant 0 : index
    %51 = vector.load %arg15[%c0_24, %c0_25] : memref<8x1xf32, #tpu.memory_space<vmem>>, vector<8x1xf32>
    %52 = arith.mulf %47, %51 : vector<8x1xf32>
    %cst_26 = arith.constant dense<0.000000e+00> : vector<8xf32>
    %53 = vector.multi_reduction <add>, %50, %cst_26 [1] : vector<8x8xf32> to vector<8xf32>
    %54 = vector.shape_cast %53 : vector<8xf32> to vector<8x1xf32>
    %55 = arith.addf %52, %54 : vector<8x1xf32>
    %c0_27 = arith.constant 0 : index
    %c0_28 = arith.constant 0 : index
    %56 = vector.load %arg15[%c0_27, %c0_28] : memref<8x1xf32, #tpu.memory_space<vmem>>, vector<8x1xf32>
    tpu.vector_store %arg15[%c0_27, %c0_28], %55 {strides = array<i32>} : memref<8x1xf32, #tpu.memory_space<vmem>>, vector<8x1xf32>,
    %57 = arith.truncf %50 : vector<8x8xf32> to vector<8x8xbf16>
    %c0_29 = arith.constant 0 : index
    %c0_30 = arith.constant 0 : index
    %c0_31 = arith.constant 0 : index
    %c0_32 = arith.constant 0 : index
    %58 = vector.load %arg6[%c0_29, %c0_30, %c0_31, %c0_32] : memref<1x1x8x8xbf16, #tpu.memory_space<vmem>>, vector<1x1x8x8xbf16>
    %59 = vector.shape_cast %58 : vector<1x1x8x8xbf16> to vector<8x8xbf16>
    %cst_33 = arith.constant dense<0.000000e+00> : vector<8x8xf32>
    %60 = tpu.matmul %57, %59, %cst_33 {dimension_numbers = #tpu.dot_dimension_numbers<[1], [0], [0], [1], [0, 0, 1, 1], [], []>} : vector<8x8xbf16>, vector<8x8xbf16>, vector<8x8xf32> -> vector<8x8xf32>
    %c0_34 = arith.constant 0 : index
    %c0_35 = arith.constant 0 : index
    %61 = vector.load %arg16[%c0_34, %c0_35] : memref<8x8xf32, #tpu.memory_space<vmem>>, vector<8x8xf32>
    %62 = vector.broadcast %47 : vector<8x1xf32> to vector<8x8xf32>
    %63 = arith.mulf %62, %61 : vector<8x8xf32>
    %64 = arith.addf %63, %60 : vector<8x8xf32>
    %c0_36 = arith.constant 0 : index
    %c0_37 = arith.constant 0 : index
    %65 = vector.load %arg16[%c0_36, %c0_37] : memref<8x8xf32, #tpu.memory_space<vmem>>, vector<8x8xf32>
    tpu.vector_store %arg16[%c0_36, %c0_37], %64 {strides = array<i32>} : memref<8x8xf32, #tpu.memory_space<vmem>>, vector<8x8xf32>,
    %c0_38 = arith.constant 0 : index
    %c0_39 = arith.constant 0 : index
    %66 = vector.load %arg14[%c0_38, %c0_39] : memref<8x1xf32, #tpu.memory_space<vmem>>, vector<8x1xf32>
    tpu.vector_store %arg14[%c0_38, %c0_39], %45 {strides = array<i32>} : memref<8x1xf32, #tpu.memory_space<vmem>>, vector<8x1xf32>,
    %c0_i32_40 = arith.constant 0 : i32
    %67 = arith.cmpi eq, %arg3, %c0_i32_40 : i32
    %68 = arith.extui %67 : i1 to i32
    %c0_i32_41 = arith.constant 0 : i32
    %69 = arith.cmpi ne, %68, %c0_i32_41 : i32
    scf.if %69 {
      %c0_42 = arith.constant 0 : index
      %c0_43 = arith.constant 0 : index
      %70 = vector.load %arg16[%c0_42, %c0_43] : memref<8x8xf32, #tpu.memory_space<vmem>>, vector<8x8xf32>
      %c0_44 = arith.constant 0 : index
      %c0_45 = arith.constant 0 : index
      %71 = vector.load %arg15[%c0_44, %c0_45] : memref<8x1xf32, #tpu.memory_space<vmem>>, vector<8x1xf32>
      %72 = vector.broadcast %71 : vector<8x1xf32> to vector<8x8xf32>
      %73 = arith.divf %70, %72 : vector<8x8xf32>
      %74 = arith.truncf %73 : vector<8x8xf32> to vector<8x8xbf16>
      %c0_46 = arith.constant 0 : index
      %c0_47 = arith.constant 0 : index
      %c0_48 = arith.constant 0 : index
      %c0_49 = arith.constant 0 : index
      %75 = vector.load %arg13[%c0_46, %c0_47, %c0_48, %c0_49] : memref<1x1x8x8xbf16, #tpu.memory_space<vmem>>, vector<1x1x8x8xbf16>
      %76 = vector.shape_cast %75 : vector<1x1x8x8xbf16> to vector<8x8xbf16>
      %77 = vector.shape_cast %74 : vector<8x8xbf16> to vector<1x1x8x8xbf16>
      tpu.vector_store %arg13[%c0_46, %c0_47, %c0_48, %c0_49], %77 {strides = array<i32>} : memref<1x1x8x8xbf16, #tpu.memory_space<vmem>>, vector<1x1x8x8xbf16>,
    } else {
    }
    return
  }
  func.func @transform_0(%arg0: i32, %arg1: i32, %arg2: i32, %arg3: i32) -> (i32, i32, i32, i32) {
    %c0_i32 = arith.constant 0 : i32
    %c0_i32_0 = arith.constant 0 : i32
    return %arg0, %arg1, %arg2, %c0_i32 : i32, i32, i32, i32
  }
  func.func @transform_1(%arg0: i32, %arg1: i32, %arg2: i32, %arg3: i32) -> (i32, i32, i32, i32) {
    %c0_i32 = arith.constant 0 : i32
    %c0_i32_0 = arith.constant 0 : i32
    return %arg0, %arg1, %arg3, %c0_i32 : i32, i32, i32, i32
  }
  func.func @transform_2(%arg0: i32, %arg1: i32, %arg2: i32, %arg3: i32) -> (i32, i32, i32, i32) {
    %c0_i32 = arith.constant 0 : i32
    %c0_i32_0 = arith.constant 0 : i32
    return %arg0, %arg1, %arg3, %c0_i32 : i32, i32, i32, i32
  }
  func.func @transform_3(%arg0: i32, %arg1: i32, %arg2: i32, %arg3: i32) -> (i32, i32) {
    %c0_i32 = arith.constant 0 : i32
    %c0_i32_0 = arith.constant 0 : i32
    return %arg2, %c0_i32 : i32, i32
  }
  func.func @transform_4(%arg0: i32, %arg1: i32, %arg2: i32, %arg3: i32) -> (i32, i32) {
    %c0_i32 = arith.constant 0 : i32
    %c0_i32_0 = arith.constant 0 : i32
    return %arg2, %c0_i32 : i32, i32
  }
  func.func @transform_5(%arg0: i32, %arg1: i32, %arg2: i32, %arg3: i32) -> (i32, i32) {
    %c0_i32 = arith.constant 0 : i32
    %c0_i32_0 = arith.constant 0 : i32
    return %arg2, %c0_i32 : i32, i32
  }
  func.func @transform_6(%arg0: i32, %arg1: i32, %arg2: i32, %arg3: i32) -> (i32, i32) {
    %c0_i32 = arith.constant 0 : i32
    %c0_i32_0 = arith.constant 0 : i32
    return %arg3, %c0_i32 : i32, i32
  }
  func.func @transform_7(%arg0: i32, %arg1: i32, %arg2: i32, %arg3: i32) -> (i32, i32) {
    %c0_i32 = arith.constant 0 : i32
    %c0_i32_0 = arith.constant 0 : i32
    return %arg3, %c0_i32 : i32, i32
  }
  func.func @transform_8(%arg0: i32, %arg1: i32, %arg2: i32, %arg3: i32) -> (i32, i32) {
    %c0_i32 = arith.constant 0 : i32
    %c0_i32_0 = arith.constant 0 : i32
    return %arg3, %c0_i32 : i32, i32
  }
  func.func @transform_9(%arg0: i32, %arg1: i32, %arg2: i32, %arg3: i32) -> (i32, i32, i32, i32) {
    %c0_i32 = arith.constant 0 : i32
    %c0_i32_0 = arith.constant 0 : i32
    return %arg0, %arg1, %arg2, %c0_i32 : i32, i32, i32, i32
  }
}

module attributes {stable_mosaic.version = 11 : i64} {
  func.func @_linear_kernel(%arg0: i32, %arg1: i32, %arg2: i32, %arg3: memref<16x32xbf16, #tpu.memory_space<vmem>>, %arg4: memref<32x32xf32, #tpu.memory_space<vmem>>, %arg5: memref<1x32xf32, #tpu.memory_space<vmem>>, %arg6: memref<16x32xf32, #tpu.memory_space<vmem>>, %arg7: memref<16x32xf32, #tpu.memory_space<vmem>>) attributes {dimension_semantics = [#tpu.dimension_semantics<parallel>, #tpu.dimension_semantics<parallel>, #tpu.dimension_semantics<arbitrary>], iteration_bounds = array<i64: 1, 1, 1>, scalar_prefetch = 0 : i64, scratch_operands = 1 : i64, tpu.core_type = #tpu.core_type<tc>, window_params = [{transform_indices = @transform_0, window_bounds = array<i64: 16, 32>}, {transform_indices = @transform_1, window_bounds = array<i64: 32, 32>}, {transform_indices = @transform_2, window_bounds = array<i64: 1, 32>}, {transform_indices = @transform_3, window_bounds = array<i64: 16, 32>}]} {
    %c0_i32 = arith.constant 0 : i32
    %0 = arith.cmpi eq, %arg2, %c0_i32 : i32
    %1 = arith.extui %0 : i1 to i32
    %c0_i32_0 = arith.constant 0 : i32
    %2 = arith.cmpi ne, %1, %c0_i32_0 : i32
    scf.if %2 {
      %cst_10 = arith.constant 0.000000e+00 : f32
      %13 = vector.broadcast %cst_10 : f32 to vector<16x32xf32>
      %c0_11 = arith.constant 0 : index
      %c0_12 = arith.constant 0 : index
      %14 = vector.load %arg7[%c0_11, %c0_12] : memref<16x32xf32, #tpu.memory_space<vmem>>, vector<16x32xf32>
      tpu.vector_store %arg7[%c0_11, %c0_12], %13 {strides = array<i32>} : memref<16x32xf32, #tpu.memory_space<vmem>>, vector<16x32xf32>,
    } else {
    }
    %c0 = arith.constant 0 : index
    %c0_1 = arith.constant 0 : index
    %3 = vector.load %arg7[%c0, %c0_1] : memref<16x32xf32, #tpu.memory_space<vmem>>, vector<16x32xf32>
    %c0_2 = arith.constant 0 : index
    %c0_3 = arith.constant 0 : index
    %4 = vector.load %arg3[%c0_2, %c0_3] : memref<16x32xbf16, #tpu.memory_space<vmem>>, vector<16x32xbf16>
    %c0_4 = arith.constant 0 : index
    %c0_5 = arith.constant 0 : index
    %5 = vector.load %arg4[%c0_4, %c0_5] : memref<32x32xf32, #tpu.memory_space<vmem>>, vector<32x32xf32>
    %6 = arith.truncf %5 : vector<32x32xf32> to vector<32x32xbf16>
    %cst = arith.constant dense<0.000000e+00> : vector<16x32xf32>
    %7 = tpu.matmul %4, %6, %cst {dimension_numbers = #tpu.dot_dimension_numbers<[1], [0], [0], [1], [0, 0, 1, 1], [], []>} : vector<16x32xbf16>, vector<32x32xbf16>, vector<16x32xf32> -> vector<16x32xf32>
    %8 = arith.addf %3, %7 : vector<16x32xf32>
    %c0_6 = arith.constant 0 : index
    %c0_7 = arith.constant 0 : index
    %9 = vector.load %arg7[%c0_6, %c0_7] : memref<16x32xf32, #tpu.memory_space<vmem>>, vector<16x32xf32>
    tpu.vector_store %arg7[%c0_6, %c0_7], %8 {strides = array<i32>} : memref<16x32xf32, #tpu.memory_space<vmem>>, vector<16x32xf32>,
    %c0_i32_8 = arith.constant 0 : i32
    %10 = arith.cmpi eq, %arg2, %c0_i32_8 : i32
    %11 = arith.extui %10 : i1 to i32
    %c0_i32_9 = arith.constant 0 : i32
    %12 = arith.cmpi ne, %11, %c0_i32_9 : i32
    scf.if %12 {
      %c0_10 = arith.constant 0 : index
      %c0_11 = arith.constant 0 : index
      %13 = vector.load %arg7[%c0_10, %c0_11] : memref<16x32xf32, #tpu.memory_space<vmem>>, vector<16x32xf32>
      %c0_12 = arith.constant 0 : index
      %c0_13 = arith.constant 0 : index
      %14 = vector.load %arg5[%c0_12, %c0_13] : memref<1x32xf32, #tpu.memory_space<vmem>>, vector<1x32xf32>
      %15 = vector.broadcast %14 : vector<1x32xf32> to vector<16x32xf32>
      %16 = arith.addf %13, %15 : vector<16x32xf32>
      %c0_14 = arith.constant 0 : index
      %c0_15 = arith.constant 0 : index
      %17 = vector.load %arg6[%c0_14, %c0_15] : memref<16x32xf32, #tpu.memory_space<vmem>>, vector<16x32xf32>
      tpu.vector_store %arg6[%c0_14, %c0_15], %16 {strides = array<i32>} : memref<16x32xf32, #tpu.memory_space<vmem>>, vector<16x32xf32>,
    } else {
    }
    return
  }
  func.func @transform_0(%arg0: i32, %arg1: i32, %arg2: i32) -> (i32, i32) {
    %c0_i32 = arith.constant 0 : i32
    return %arg0, %arg2 : i32, i32
  }
  func.func @transform_1(%arg0: i32, %arg1: i32, %arg2: i32) -> (i32, i32) {
    %c0_i32 = arith.constant 0 : i32
    return %arg2, %arg1 : i32, i32
  }
  func.func @transform_2(%arg0: i32, %arg1: i32, %arg2: i32) -> (i32, i32) {
    %c0_i32 = arith.constant 0 : i32
    %c0_i32_0 = arith.constant 0 : i32
    return %c0_i32, %arg1 : i32, i32
  }
  func.func @transform_3(%arg0: i32, %arg1: i32, %arg2: i32) -> (i32, i32) {
    %c0_i32 = arith.constant 0 : i32
    return %arg0, %arg1 : i32, i32
  }
}

</mosaic_0001>

<llo_original>
// kernel: rope_self_attention.5
$region0: #{rope_self_attention.5}
  #allocation0 [shape = 'u32[]', space=smem, size = 0x4, offset = 0x4, fixed_abs, tag = 'smem constant byte address 0x4 - core index']
  #allocation1 [shape = 'u32[144,128]{1,0:T(1,128)}', space=vmem, size = 0x12000, scoped, tag = 'internal scratch']
  #allocation2 [shape = 'f32[16,32]{1,0:T(8,128)}', space=vmem, size = 0x2000, scoped, tag = 'scratch operand']
  %s0 = inlined_call_operand.vmem [shape: bf16[16,32], index: 0, kind: input, shape index: {}]
  %s1 = inlined_call_operand.vmem [shape: f32[32,32], index: 1, kind: input, shape index: {}]
  %s2 = inlined_call_operand.vmem [shape: f32[1,32], index: 2, kind: input, shape index: {}]
  %s3 = inlined_call_operand.hbm [shape: f32[16,32], index: 3, kind: output, shape index: {}]
  %s4 = sld [smem:[#allocation0]]
  $region30: #{rope_self_attention.5} parent=0
    _
  %s6 = ssub.s32 1, %s4
  %s7 = scalar_select 0, %s6, %s4
  $region1: #{rope_self_attention.5} parent=0
    #allocation3 [shape = 'u8[8192]{0}', space=vmem, size = 0x2000, scoped, tag = 'output window, operand 0, single buffered']
    #allocation4 [shape = 's32[1]{0}', space=sflag, size = 0x4, scoped, tag = 'scoped memory for rope_self_attention.5']
    %8 = vsyncpa [#allocation4], 0
    // Predicated region
    $region2: #{rope_self_attention.5} parent=1 // pred_check
      _
    $region3: #{rope_self_attention.5} parent=1 // pred_check_branch
      %10 = sbr.rel (0) target = $region5
    $region4: #{rope_self_attention.5} parent=1 // pred_region
      _
    $region5: #{rope_self_attention.5} parent=1 // pred_fallthru
      _
    // Predicated region
    $region6: #{rope_self_attention.5} parent=1 // pred_check
      _
    $region7: #{rope_self_attention.5} parent=1 // pred_check_branch
      %12 = sbr.rel (0) target = $region9
    $region8: #{rope_self_attention.5} parent=1 // pred_region
      _
    $region9: #{rope_self_attention.5} parent=1 // pred_fallthru
      _
    // Predicated region
    $region10: #{rope_self_attention.5} parent=1 // pred_check
      _
    $region11: #{rope_self_attention.5} parent=1 // pred_check_branch
      %14 = sbr.rel (0) target = $region13
    $region12: #{rope_self_attention.5} parent=1 // pred_region
      _
    $region13: #{rope_self_attention.5} parent=1 // pred_fallthru
      _
    %p16 = scmp.eq.s32.totalorder 0, 0
    // Predicated region
    $region14: #{rope_self_attention.5} parent=1 // pred_check
      %p17 = pneg %p16
    $region15: #{rope_self_attention.5} parent=1 // pred_check_branch
      %19 = sbr.rel (%p17) target = $region17
    $region16: #{rope_self_attention.5} parent=1 // pred_region
      %vm20 = vcmask 261120
      %21 = vst.msk [vmem:[#allocation2] sm:$0xff] %vm20, 0.0
      %22 = vst.msk [vmem:[#allocation2 + $0x8] sm:$0xff] %vm20, 0.0
    $region17: #{rope_self_attention.5} parent=1 // pred_fallthru
      _
    %v23 = vld [vmem:[#allocation2] sm:$0xff]
    %v24 = vld [vmem:[#allocation2 + $0x8] sm:$0xff]
    %v25 = vld [vmem:[%s0] sm:$0xf]
    %v26 = vld [vmem:[%s0 + $0x4] sm:$0xf]
    %v27 = vld [vmem:[%s1] sm:$0xff]
    %v28 = vld [vmem:[%s1 + $0x8] sm:$0xff]
    %v29 = vld [vmem:[%s1 + $0x10] sm:$0xff]
    %v30 = vld [vmem:[%s1 + $0x18] sm:$0xff]
    %v31 = vpack.c.bf16 %v28, %v27
    %v32 = vpack.c.bf16 %v30, %v29
    %v35 = vunpack.c.l.b16 %v25
    %v36 = vunpack.c.l.b16 %v26
    %v37 = vpack.c.b16 %v36, %v35
    %vm38 = vcmask 261120
    %v40 = vsel %vm38, %v37, 0
    %42 = vmatprep.subr.bf16.mxu0 0
    %43 = vmatpush1.bf16.msra.mxu0 %v31
    %44 = vmatprep.subr.bf16.mxu0 0
    %45 = vmatpush1.bf16.msra.mxu0 %v32
    %46 = vmatprep.subr.bf16.mxu0 0
    %47 = vmatpush1.bf16.msra.mxu0 0
    %48 = vmatprep.subr.bf16.mxu0 0
    %49 = vmatpush1.bf16.msra.mxu0 0
    %50 = vmatprep.subr.bf16.mxu0 0
    %51 = vmatpush1.bf16.msra.mxu0 0
    %52 = vmatprep.subr.bf16.mxu0 0
    %53 = vmatpush1.bf16.msra.mxu0 0
    %54 = vmatprep.subr.bf16.mxu0 0
    %55 = vmatpush1.bf16.msra.mxu0 0
    %56 = vmatprep.subr.bf16.mxu0 0
    %57 = vmatpush1.bf16.msra.mxu0 0
    %58 = vmatprep.subr.bf16.mxu0 0
    %59 = vmatpush1.bf16.msra.mxu0 0
    %60 = vmatprep.subr.bf16.mxu0 0
    %61 = vmatpush1.bf16.msra.mxu0 0
    %62 = vmatprep.subr.bf16.mxu0 0
    %63 = vmatpush1.bf16.msra.mxu0 0
    %64 = vmatprep.subr.bf16.mxu0 0
    %65 = vmatpush1.bf16.msra.mxu0 0
    %66 = vmatprep.subr.bf16.mxu0 0
    %67 = vmatpush1.bf16.msra.mxu0 0
    %68 = vmatprep.subr.bf16.mxu0 0
    %69 = vmatpush1.bf16.msra.mxu0 0
    %70 = vmatprep.subr.bf16.mxu0 0
    %71 = vmatpush1.bf16.msra.mxu0 0
    %72 = vmatprep.subr.bf16.mxu0 0
    %73 = vmatpush1.bf16.msra.mxu0 0
    %74 = vmatprep.mubr.bf16.mxu0 0
    %75 = vmatmul.mubr.bf16.gmra.mrb[0].mxu0 %v40
    %v76 = vpop.f32.mrb[0].mxu0
    %v77 = vadd.f32 0.0, %v76
    %v78 = vpop.f32.mrb[0].mxu0
    %v79 = vpop.f32.mrb[0].mxu0
    %v80 = vadd.f32 0.0, %v79
    %v81 = vpop.f32.mrb[0].mxu0
    %82 = vdwg.mxu0
    %v83 = vadd.f32 %v23, %v77
    %v84 = vadd.f32 %v24, %v80
    %85 = vst.msk [vmem:[#allocation2] sm:$0xff] %vm38, %v83
    %86 = vst.msk [vmem:[#allocation2 + $0x8] sm:$0xff] %vm38, %v84
    // Predicated region
    $region18: #{rope_self_attention.5} parent=1 // pred_check
      %p87 = pneg %p16
    $region19: #{rope_self_attention.5} parent=1 // pred_check_branch
      %89 = sbr.rel (%p87) target = $region21
    $region20: #{rope_self_attention.5} parent=1 // pred_region
      %v90 = vld [vmem:[#allocation2] sm:$0xff]
      %v91 = vld [vmem:[#allocation2 + $0x8] sm:$0xff]
      %v92 = vld [vmem:[%s2] sm:$0x1]
      %v94 = vlaneseq
      %v95 = vshrl.u32 %v94, 7
      %v96 = vsub.s32 0, %v95
      %v97 = vrot.slane %v92, %v96
      %v99 = vadd.f32 %v90, %v97
      %v100 = vadd.f32 %v91, %v97
      %101 = vst.msk [vmem:[#allocation3] sm:$0xff] %vm38, %v99
      %102 = vst.msk [vmem:[#allocation3 + $0x8] sm:$0xff] %vm38, %v100
    $region21: #{rope_self_attention.5} parent=1 // pred_fallthru
      _
    // Predicated region
    $region22: #{rope_self_attention.5} parent=1 // pred_check
      _
    $region23: #{rope_self_attention.5} parent=1 // pred_check_branch
      %104 = sbr.rel (0) target = $region25
    $region24: #{rope_self_attention.5} parent=1 // pred_region
      %s106 = ssub.s32 256, 256
      %107 = vsyncadd [#allocation4], %s106
      %s108 = sshll.u32 [#allocation3], 4
      %s109 = int_to_ptr.vmem [resolvable:$true] %s108
      %114 = dma.vmem_to_hbm [thread:$0]  %s109, 256, %s3, [#allocation4], 128, 128, 8
    $region25: #{rope_self_attention.5} parent=1 // pred_fallthru
      _
    // Predicated region
    $region26: #{rope_self_attention.5} parent=1 // pred_check
      _
    $region27: #{rope_self_attention.5} parent=1 // pred_check_branch
      %116 = sbr.rel (0) target = $region29
    $region28: #{rope_self_attention.5} parent=1 // pred_region
      %117 = dma.done [#allocation4], 256
    $region29: #{rope_self_attention.5} parent=1 // pred_fallthru
      _
    %118 = vsyncpa [#allocation4], 1

// kernel: rope_self_attention.3
$region0: #{rope_self_attention.3}
  #allocation0 [shape = 'u32[]', space=smem, size = 0x4, offset = 0x4, fixed_abs, tag = 'smem constant byte address 0x4 - core index']
  #allocation1 [shape = 'u32[144,128]{1,0:T(1,128)}', space=vmem, size = 0x12000, scoped, tag = 'internal scratch']
  #allocation2 [shape = 'f32[16,96]{1,0:T(8,128)}', space=vmem, size = 0x2000, scoped, tag = 'scratch operand']
  %s0 = inlined_call_operand.hbm [shape: f32[16,32], index: 0, kind: input, shape index: {}]
  %s1 = inlined_call_operand.hbm [shape: f32[32,96], index: 1, kind: input, shape index: {}]
  %s2 = inlined_call_operand.vmem [shape: f32[1,96], index: 2, kind: input, shape index: {}]
  %s3 = inlined_call_operand.vmem [shape: bf16[16,96], index: 3, kind: output, shape index: {}]
  %s4 = sld [smem:[#allocation0]]
  $region38: #{rope_self_attention.3} parent=0
    _
  %s6 = ssub.s32 1, %s4
  %s7 = scalar_select 0, %s6, %s4
  $region1: #{rope_self_attention.3} parent=0
    #allocation3 [shape = 'u8[8192]{0}', space=vmem, size = 0x2000, scoped, tag = 'input window, operand 0, single buffered']
    #allocation4 [shape = 's32[1]{0}', space=sflag, size = 0x4, scoped, tag = 'scoped memory for rope_self_attention.3']
    #allocation5 [shape = 'u8[16384]{0}', space=vmem, size = 0x4000, scoped, tag = 'input window, operand 1, single buffered']
    #allocation6 [shape = 's32[1]{0}', space=sflag, size = 0x4, scoped, tag = 'scoped memory for rope_self_attention.3']
    %8 = vsyncpa [#allocation4], 0
    %9 = vsyncpa [#allocation6], 0
    // Predicated region
    $region2: #{rope_self_attention.3} parent=1 // pred_check
      _
    $region3: #{rope_self_attention.3} parent=1 // pred_check_branch
      %11 = sbr.rel (0) target = $region5
    $region4: #{rope_self_attention.3} parent=1 // pred_region
      %s13 = ssub.s32 256, 256
      %14 = vsyncadd [#allocation4], %s13
      %s15 = sshll.u32 [#allocation3], 4
      %s16 = int_to_ptr.vmem [resolvable:$true] %s15
      %21 = dma.hbm_to_vmem [thread:$0]  %s0, 256, %s16, [#allocation4], 128, 128, 8
    $region5: #{rope_self_attention.3} parent=1 // pred_fallthru
      _
    // Predicated region
    $region6: #{rope_self_attention.3} parent=1 // pred_check
      _
    $region7: #{rope_self_attention.3} parent=1 // pred_check_branch
      %23 = sbr.rel (0) target = $region9
    $region8: #{rope_self_attention.3} parent=1 // pred_region
      %s25 = ssub.s32 512, 512
      %26 = vsyncadd [#allocation6], %s25
      %s27 = sshll.u32 [#allocation5], 4
      %s28 = int_to_ptr.vmem [resolvable:$true] %s27
      %33 = dma.hbm_to_vmem [thread:$0]  %s1, 512, %s28, [#allocation6], 128, 128, 8
    $region9: #{rope_self_attention.3} parent=1 // pred_fallthru
      _
    // Predicated region
    $region10: #{rope_self_attention.3} parent=1 // pred_check
      _
    $region11: #{rope_self_attention.3} parent=1 // pred_check_branch
      %35 = sbr.rel (0) target = $region13
    $region12: #{rope_self_attention.3} parent=1 // pred_region
      _
    $region13: #{rope_self_attention.3} parent=1 // pred_fallthru
      _
    // Predicated region
    $region14: #{rope_self_attention.3} parent=1 // pred_check
      _
    $region15: #{rope_self_attention.3} parent=1 // pred_check_branch
      %37 = sbr.rel (0) target = $region17
    $region16: #{rope_self_attention.3} parent=1 // pred_region
      %38 = dma.done [#allocation4], 256
    $region17: #{rope_self_attention.3} parent=1 // pred_fallthru
      _
    // Predicated region
    $region18: #{rope_self_attention.3} parent=1 // pred_check
      _
    $region19: #{rope_self_attention.3} parent=1 // pred_check_branch
      %40 = sbr.rel (0) target = $region21
    $region20: #{rope_self_attention.3} parent=1 // pred_region
      %41 = dma.done [#allocation6], 512
    $region21: #{rope_self_attention.3} parent=1 // pred_fallthru
      _
    %p43 = scmp.eq.s32.totalorder 0, 0
    // Predicated region
    $region22: #{rope_self_attention.3} parent=1 // pred_check
      %p44 = pneg %p43
    $region23: #{rope_self_attention.3} parent=1 // pred_check_branch
      %46 = sbr.rel (%p44) target = $region25
    $region24: #{rope_self_attention.3} parent=1 // pred_region
      %vm47 = vcmask 785408
      %48 = vst.msk [vmem:[#allocation2] sm:$0xff] %vm47, 0.0
      %49 = vst.msk [vmem:[#allocation2 + $0x8] sm:$0xff] %vm47, 0.0
    $region25: #{rope_self_attention.3} parent=1 // pred_fallthru
      _
    %v50 = vld [vmem:[#allocation2] sm:$0xff]
    %v51 = vld [vmem:[#allocation2 + $0x8] sm:$0xff]
    %v52 = vld [vmem:[#allocation3] sm:$0xff]
    %v53 = vld [vmem:[#allocation3 + $0x8] sm:$0xff]
    %v54 = vpack.c.bf16 %v53, %v52
    %v55 = vld [vmem:[#allocation5] sm:$0xff]
    %v56 = vld [vmem:[#allocation5 + $0x8] sm:$0xff]
    %v57 = vld [vmem:[#allocation5 + $0x10] sm:$0xff]
    %v58 = vld [vmem:[#allocation5 + $0x18] sm:$0xff]
    %v59 = vpack.c.bf16 %v56, %v55
    %v60 = vpack.c.bf16 %v58, %v57
    %vm61 = vcmask 261120
    %v63 = vsel %vm61, %v54, 0
    %65 = vmatprep.subr.bf16.mxu0 0
    %66 = vmatpush1.bf16.msra.mxu0 %v59
    %67 = vmatprep.subr.bf16.mxu0 0
    %68 = vmatpush1.bf16.msra.mxu0 %v60
    %69 = vmatprep.subr.bf16.mxu0 0
    %70 = vmatpush1.bf16.msra.mxu0 0
    %71 = vmatprep.subr.bf16.mxu0 0
    %72 = vmatpush1.bf16.msra.mxu0 0
    %73 = vmatprep.subr.bf16.mxu0 0
    %74 = vmatpush1.bf16.msra.mxu0 0
    %75 = vmatprep.subr.bf16.mxu0 0
    %76 = vmatpush1.bf16.msra.mxu0 0
    %77 = vmatprep.subr.bf16.mxu0 0
    %78 = vmatpush1.bf16.msra.mxu0 0
    %79 = vmatprep.subr.bf16.mxu0 0
    %80 = vmatpush1.bf16.msra.mxu0 0
    %81 = vmatprep.subr.bf16.mxu0 0
    %82 = vmatpush1.bf16.msra.mxu0 0
    %83 = vmatprep.subr.bf16.mxu0 0
    %84 = vmatpush1.bf16.msra.mxu0 0
    %85 = vmatprep.subr.bf16.mxu0 0
    %86 = vmatpush1.bf16.msra.mxu0 0
    %87 = vmatprep.subr.bf16.mxu0 0
    %88 = vmatpush1.bf16.msra.mxu0 0
    %89 = vmatprep.subr.bf16.mxu0 0
    %90 = vmatpush1.bf16.msra.mxu0 0
    %91 = vmatprep.subr.bf16.mxu0 0
    %92 = vmatpush1.bf16.msra.mxu0 0
    %93 = vmatprep.subr.bf16.mxu0 0
    %94 = vmatpush1.bf16.msra.mxu0 0
    %95 = vmatprep.subr.bf16.mxu0 0
    %96 = vmatpush1.bf16.msra.mxu0 0
    %97 = vmatprep.mubr.bf16.mxu0 0
    %98 = vmatmul.mubr.bf16.gmra.mrb[0].mxu0 %v63
    %v99 = vpop.f32.mrb[0].mxu0
    %v100 = vadd.f32 0.0, %v99
    %v101 = vpop.f32.mrb[0].mxu0
    %v102 = vpop.f32.mrb[0].mxu0
    %v103 = vadd.f32 0.0, %v102
    %v104 = vpop.f32.mrb[0].mxu0
    %105 = vdwg.mxu0
    %v106 = vadd.f32 %v50, %v100
    %v107 = vadd.f32 %v51, %v103
    %vm108 = vcmask 785408
    %109 = vst.msk [vmem:[#allocation2] sm:$0xff] %vm108, %v106
    %110 = vst.msk [vmem:[#allocation2 + $0x8] sm:$0xff] %vm108, %v107
    // Predicated region
    $region26: #{rope_self_attention.3} parent=1 // pred_check
      %p111 = pneg %p43
    $region27: #{rope_self_attention.3} parent=1 // pred_check_branch
      %113 = sbr.rel (%p111) target = $region29
    $region28: #{rope_self_attention.3} parent=1 // pred_region
      %v114 = vld [vmem:[#allocation2] sm:$0xff]
      %v115 = vld [vmem:[#allocation2 + $0x8] sm:$0xff]
      %v116 = vld [vmem:[%s2] sm:$0x1]
      %v118 = vlaneseq
      %v119 = vshrl.u32 %v118, 7
      %v120 = vsub.s32 0, %v119
      %v121 = vrot.slane %v116, %v120
      %v123 = vadd.f32 %v114, %v121
      %v124 = vadd.f32 %v115, %v121
      %v125 = vpack.c.bf16 %v124, %v123
      %v127 = vunpack.c.l.b16 %v125
      %v128 = vunpack.c.h.b16 %v125
      %v129 = vpack.c.b16 %v127, %v127
      %v130 = vpack.c.b16 %v128, %v128
      %vm133 = vcmask 781312
      %134 = vst.msk [vmem:[%s3] sm:$0xf] %vm133, %v129
      %135 = vst.msk [vmem:[%s3 + $0x4] sm:$0xf] %vm133, %v130
    $region29: #{rope_self_attention.3} parent=1 // pred_fallthru
      _
    // Predicated region
    $region30: #{rope_self_attention.3} parent=1 // pred_check
      _
    $region31: #{rope_self_attention.3} parent=1 // pred_check_branch
      %137 = sbr.rel (0) target = $region33
    $region32: #{rope_self_attention.3} parent=1 // pred_region
      _
    $region33: #{rope_self_attention.3} parent=1 // pred_fallthru
      _
    // Predicated region
    $region34: #{rope_self_attention.3} parent=1 // pred_check
      _
    $region35: #{rope_self_attention.3} parent=1 // pred_check_branch
      %139 = sbr.rel (0) target = $region37
    $region36: #{rope_self_attention.3} parent=1 // pred_region
      _
    $region37: #{rope_self_attention.3} parent=1 // pred_fallthru
      _
    %140 = vsyncpa [#allocation4], 1
    %141 = vsyncpa [#allocation6], 1

// kernel: rope_self_attention.4
$region0: #{rope_self_attention.4}
  #allocation0 [shape = 'u32[]', space=smem, size = 0x4, offset = 0x4, fixed_abs, tag = 'smem constant byte address 0x4 - core index']
  #allocation1 [shape = 'u32[144,128]{1,0:T(1,128)}', space=vmem, size = 0x12000, scoped, tag = 'internal scratch']
  #allocation2 [shape = 'f32[8,1]{1,0:T(8,128)}', space=vmem, size = 0x1000, scoped, tag = 'scratch operand']
  #allocation3 [shape = 'f32[8,1]{1,0:T(8,128)}', space=vmem, size = 0x1000, scoped, tag = 'scratch operand']
  #allocation4 [shape = 'f32[8,8]{1,0:T(8,128)}', space=vmem, size = 0x1000, scoped, tag = 'scratch operand']
  %s0 = inlined_call_operand.vmem [shape: bf16[2,4,8,8], index: 0, kind: input, shape index: {}]
  %s1 = inlined_call_operand.vmem [shape: bf16[2,4,8,8], index: 1, kind: input, shape index: {}]
  %s2 = inlined_call_operand.vmem [shape: bf16[2,4,8,8], index: 2, kind: input, shape index: {}]
  %s3 = inlined_call_operand.vmem [shape: f32[8,8], index: 3, kind: input, shape index: {}, may-alias: {3,6}]
  %s4 = inlined_call_operand.vmem [shape: f32[8,8], index: 4, kind: input, shape index: {}, may-alias: {4,7}]
  %s5 = inlined_call_operand.vmem [shape: f32[8,8], index: 5, kind: input, shape index: {}, may-alias: {5,8}]
  %s6 = inlined_call_operand.vmem [shape: f32[8,8], index: 6, kind: input, shape index: {}, may-alias: {3,6}]
  %s7 = inlined_call_operand.vmem [shape: f32[8,8], index: 7, kind: input, shape index: {}, may-alias: {4,7}]
  %s8 = inlined_call_operand.vmem [shape: f32[8,8], index: 8, kind: input, shape index: {}, may-alias: {5,8}]
  %s9 = inlined_call_operand.vmem [shape: bf16[2,4,8,8], index: 9, kind: output, shape index: {}]
  %s10 = sld [smem:[#allocation0]]
  $region77: #{rope_self_attention.4} parent=0
    _
  %s12 = ssub.s32 1, %s10
  %s13 = scalar_select 0, %s12, %s10
  loop: start=0, step=1, limit=10
  $region2: #{rope_self_attention.4} parent=0 // loop_pre_header
    _
  $region3: #{rope_self_attention.4} parent=0 // loop_header
    %s15 = sphi 0, %s19
    %p16 = scmp.ge.s32.totalorder %s15, 10
    %s22 = sphi 0, %s48
    %s23 = sphi 0, %s44
    %s24 = sphi 0, %s40
    %s25 = sphi 0, %s36
    %s26 = sphi 0, %s22
    %s27 = sphi 0, %s23
    %s28 = sphi 0, %s24
    %s29 = sphi 0, %s25
    %s30 = sphi 0, %s26
    %s31 = sphi 0, %s27
    %s32 = sphi 0, %s28
    %s33 = sphi 0, %s29
    %s55 = sphi 0, %s57
    %s58 = sphi 0, %s55
    %s59 = sphi 0, %s58
    %s75 = sphi 0, %s59
    %s85 = sphi 0, %s87
    %s88 = sphi 0, %s85
    %s89 = sphi 0, %s88
    %s105 = sphi 0, %s89
    %s115 = sphi 0, %s117
    %s118 = sphi 0, %s115
    %s119 = sphi 0, %s118
    %s135 = sphi 0, %s119
    %s141 = sphi 0, %s143
    %s144 = sphi 0, %s141
    %s145 = sphi 0, %s144
    %s161 = sphi 0, %s145
    %s167 = sphi 0, %s169
    %s170 = sphi 0, %s167
    %s171 = sphi 0, %s170
    %s187 = sphi 0, %s171
    %s193 = sphi 0, %s195
    %s196 = sphi 0, %s193
    %s197 = sphi 0, %s196
    %s213 = sphi 0, %s197
    %s219 = sphi 0, %s221
    %s222 = sphi 0, %s219
    %s223 = sphi 0, %s222
    %s239 = sphi 0, %s223
    %s245 = sphi 0, %s247
    %s248 = sphi 0, %s245
    %s249 = sphi 0, %s248
    %s265 = sphi 0, %s249
    %s271 = sphi 0, %s273
    %s274 = sphi 0, %s271
    %s275 = sphi 0, %s274
    %s291 = sphi 0, %s275
    %s301 = sphi 0, %s303
    %s304 = sphi 0, %s301
    %s305 = sphi 0, %s304
    %s321 = sphi 0, %s305
  $region4: #{rope_self_attention.4} parent=0 // loop_header_branch
    %18 = sbr.rel (%p16) target = $region8
  $region5: #{rope_self_attention.4} parent=0 // loop_body
    %s20 = ssub.s32 %s15, 1
    %s21 = ssub.s32 %s15, 2
    %s34 = sadd.s32 1, %s25
    %p35 = scmp.ge.s32.totalorder %s34, 1
    %s36 = scalar_select %p35, 0, %s34
    %s37 = sadd.s32 1, %s24
    %s38 = scalar_select %p35, %s37, %s24
    %p39 = scmp.ge.s32.totalorder %s38, 1
    %s40 = scalar_select %p39, 0, %s38
    %s41 = sadd.s32 1, %s23
    %s42 = scalar_select %p39, %s41, %s23
    %p43 = scmp.ge.s32.totalorder %s42, 4
    %s44 = scalar_select %p43, 0, %s42
    %s45 = sadd.s32 1, %s22
    %s46 = scalar_select %p43, %s45, %s22
    %p47 = scmp.ge.s32.totalorder %s46, 2
    %s48 = scalar_select %p47, 0, %s46
    %s49 = ssub.s32 %s22, %s48
    %s50 = ssub.s32 %s23, %s44
    %s51 = sor.u32 %s49, %s50
    %s52 = ssub.s32 %s24, %s40
    %s53 = sor.u32 %s51, %s52
    %p54 = scmp.eq.s32.totalorder %s53, 0
    %s56 = sadd.s32 %s55, 1
    %s57 = scalar_select %p54, %s55, %s56
    %p60 = pneg %p54
    %p61 = scmp.eq.s32.totalorder %s15, 7
    %p62 = por %p60, %p61
    %p63 = scmp.ne.s32.totalorder %s55, %s58
    %p64 = scmp.eq.s32.totalorder %s15, 0
    %p65 = por %p63, %p64
    %p66 = scmp.ne.s32.totalorder %s55, %s58
    %p67 = scmp.eq.s32.totalorder %s20, 7
    %p68 = por %p66, %p67
    %p69 = scmp.ne.s32.totalorder %s58, %s59
    %p70 = scmp.eq.s32.totalorder %s20, 0
    %p71 = por %p69, %p70
    %p72 = scmp.ne.s32.totalorder %s58, %s59
    %p73 = scmp.eq.s32.totalorder %s21, 7
    %p74 = por %p72, %p73
    %p76 = scmp.ne.s32.totalorder %s59, %s75
    %p77 = scmp.eq.s32.totalorder %s21, 0
    %p78 = por %p76, %p77
    %s79 = ssub.s32 %s22, %s48
    %s80 = ssub.s32 %s23, %s44
    %s81 = sor.u32 %s79, %s80
    %s82 = ssub.s32 %s25, %s36
    %s83 = sor.u32 %s81, %s82
    %p84 = scmp.eq.s32.totalorder %s83, 0
    %s86 = sadd.s32 %s85, 1
    %s87 = scalar_select %p84, %s85, %s86
    %p90 = pneg %p84
    %p91 = scmp.eq.s32.totalorder %s15, 7
    %p92 = por %p90, %p91
    %p93 = scmp.ne.s32.totalorder %s85, %s88
    %p94 = scmp.eq.s32.totalorder %s15, 0
    %p95 = por %p93, %p94
    %p96 = scmp.ne.s32.totalorder %s85, %s88
    %p97 = scmp.eq.s32.totalorder %s20, 7
    %p98 = por %p96, %p97
    %p99 = scmp.ne.s32.totalorder %s88, %s89
    %p100 = scmp.eq.s32.totalorder %s20, 0
    %p101 = por %p99, %p100
    %p102 = scmp.ne.s32.totalorder %s88, %s89
    %p103 = scmp.eq.s32.totalorder %s21, 7
    %p104 = por %p102, %p103
    %p106 = scmp.ne.s32.totalorder %s89, %s105
    %p107 = scmp.eq.s32.totalorder %s21, 0
    %p108 = por %p106, %p107
    %s109 = ssub.s32 %s22, %s48
    %s110 = ssub.s32 %s23, %s44
    %s111 = sor.u32 %s109, %s110
    %s112 = ssub.s32 %s25, %s36
    %s113 = sor.u32 %s111, %s112
    %p114 = scmp.eq.s32.totalorder %s113, 0
    %s116 = sadd.s32 %s115, 1
    %s117 = scalar_select %p114, %s115, %s116
    %p120 = pneg %p114
    %p121 = scmp.eq.s32.totalorder %s15, 7
    %p122 = por %p120, %p121
    %p123 = scmp.ne.s32.totalorder %s115, %s118
    %p124 = scmp.eq.s32.totalorder %s15, 0
    %p125 = por %p123, %p124
    %p126 = scmp.ne.s32.totalorder %s115, %s118
    %p127 = scmp.eq.s32.totalorder %s20, 7
    %p128 = por %p126, %p127
    %p129 = scmp.ne.s32.totalorder %s118, %s119
    %p130 = scmp.eq.s32.totalorder %s20, 0
    %p131 = por %p129, %p130
    %p132 = scmp.ne.s32.totalorder %s118, %s119
    %p133 = scmp.eq.s32.totalorder %s21, 7
    %p134 = por %p132, %p133
    %p136 = scmp.ne.s32.totalorder %s119, %s135
    %p137 = scmp.eq.s32.totalorder %s21, 0
    %p138 = por %p136, %p137
    %s139 = ssub.s32 %s24, %s40
    %p140 = scmp.eq.s32.totalorder %s139, 0
    %s142 = sadd.s32 %s141, 1
    %s143 = scalar_select %p140, %s141, %s142
    %p146 = pneg %p140
    %p147 = scmp.eq.s32.totalorder %s15, 7
    %p148 = por %p146, %p147
    %p149 = scmp.ne.s32.totalorder %s141, %s144
    %p150 = scmp.eq.s32.totalorder %s15, 0
    %p151 = por %p149, %p150
    %p152 = scmp.ne.s32.totalorder %s141, %s144
    %p153 = scmp.eq.s32.totalorder %s20, 7
    %p154 = por %p152, %p153
    %p155 = scmp.ne.s32.totalorder %s144, %s145
    %p156 = scmp.eq.s32.totalorder %s20, 0
    %p157 = por %p155, %p156
    %p158 = scmp.ne.s32.totalorder %s144, %s145
    %p159 = scmp.eq.s32.totalorder %s21, 7
    %p160 = por %p158, %p159
    %p162 = scmp.ne.s32.totalorder %s145, %s161
    %p163 = scmp.eq.s32.totalorder %s21, 0
    %p164 = por %p162, %p163
    %s165 = ssub.s32 %s24, %s40
    %p166 = scmp.eq.s32.totalorder %s165, 0
    %s168 = sadd.s32 %s167, 1
    %s169 = scalar_select %p166, %s167, %s168
    %p172 = pneg %p166
    %p173 = scmp.eq.s32.totalorder %s15, 7
    %p174 = por %p172, %p173
    %p175 = scmp.ne.s32.totalorder %s167, %s170
    %p176 = scmp.eq.s32.totalorder %s15, 0
    %p177 = por %p175, %p176
    %p178 = scmp.ne.s32.totalorder %s167, %s170
    %p179 = scmp.eq.s32.totalorder %s20, 7
    %p180 = por %p178, %p179
    %p181 = scmp.ne.s32.totalorder %s170, %s171
    %p182 = scmp.eq.s32.totalorder %s20, 0
    %p183 = por %p181, %p182
    %p184 = scmp.ne.s32.totalorder %s170, %s171
    %p185 = scmp.eq.s32.totalorder %s21, 7
    %p186 = por %p184, %p185
    %p188 = scmp.ne.s32.totalorder %s171, %s187
    %p189 = scmp.eq.s32.totalorder %s21, 0
    %p190 = por %p188, %p189
    %s191 = ssub.s32 %s24, %s40
    %p192 = scmp.eq.s32.totalorder %s191, 0
    %s194 = sadd.s32 %s193, 1
    %s195 = scalar_select %p192, %s193, %s194
    %p198 = pneg %p192
    %p199 = scmp.eq.s32.totalorder %s15, 7
    %p200 = por %p198, %p199
    %p201 = scmp.ne.s32.totalorder %s193, %s196
    %p202 = scmp.eq.s32.totalorder %s15, 0
    %p203 = por %p201, %p202
    %p204 = scmp.ne.s32.totalorder %s193, %s196
    %p205 = scmp.eq.s32.totalorder %s20, 7
    %p206 = por %p204, %p205
    %p207 = scmp.ne.s32.totalorder %s196, %s197
    %p208 = scmp.eq.s32.totalorder %s20, 0
    %p209 = por %p207, %p208
    %p210 = scmp.ne.s32.totalorder %s196, %s197
    %p211 = scmp.eq.s32.totalorder %s21, 7
    %p212 = por %p210, %p211
    %p214 = scmp.ne.s32.totalorder %s197, %s213
    %p215 = scmp.eq.s32.totalorder %s21, 0
    %p216 = por %p214, %p215
    %s217 = ssub.s32 %s25, %s36
    %p218 = scmp.eq.s32.totalorder %s217, 0
    %s220 = sadd.s32 %s219, 1
    %s221 = scalar_select %p218, %s219, %s220
    %p224 = pneg %p218
    %p225 = scmp.eq.s32.totalorder %s15, 7
    %p226 = por %p224, %p225
    %p227 = scmp.ne.s32.totalorder %s219, %s222
    %p228 = scmp.eq.s32.totalorder %s15, 0
    %p229 = por %p227, %p228
    %p230 = scmp.ne.s32.totalorder %s219, %s222
    %p231 = scmp.eq.s32.totalorder %s20, 7
    %p232 = por %p230, %p231
    %p233 = scmp.ne.s32.totalorder %s222, %s223
    %p234 = scmp.eq.s32.totalorder %s20, 0
    %p235 = por %p233, %p234
    %p236 = scmp.ne.s32.totalorder %s222, %s223
    %p237 = scmp.eq.s32.totalorder %s21, 7
    %p238 = por %p236, %p237
    %p240 = scmp.ne.s32.totalorder %s223, %s239
    %p241 = scmp.eq.s32.totalorder %s21, 0
    %p242 = por %p240, %p241
    %s243 = ssub.s32 %s25, %s36
    %p244 = scmp.eq.s32.totalorder %s243, 0
    %s246 = sadd.s32 %s245, 1
    %s247 = scalar_select %p244, %s245, %s246
    %p250 = pneg %p244
    %p251 = scmp.eq.s32.totalorder %s15, 7
    %p252 = por %p250, %p251
    %p253 = scmp.ne.s32.totalorder %s245, %s248
    %p254 = scmp.eq.s32.totalorder %s15, 0
    %p255 = por %p253, %p254
    %p256 = scmp.ne.s32.totalorder %s245, %s248
    %p257 = scmp.eq.s32.totalorder %s20, 7
    %p258 = por %p256, %p257
    %p259 = scmp.ne.s32.totalorder %s248, %s249
    %p260 = scmp.eq.s32.totalorder %s20, 0
    %p261 = por %p259, %p260
    %p262 = scmp.ne.s32.totalorder %s248, %s249
    %p263 = scmp.eq.s32.totalorder %s21, 7
    %p264 = por %p262, %p263
    %p266 = scmp.ne.s32.totalorder %s249, %s265
    %p267 = scmp.eq.s32.totalorder %s21, 0
    %p268 = por %p266, %p267
    %s269 = ssub.s32 %s25, %s36
    %p270 = scmp.eq.s32.totalorder %s269, 0
    %s272 = sadd.s32 %s271, 1
    %s273 = scalar_select %p270, %s271, %s272
    %p276 = pneg %p270
    %p277 = scmp.eq.s32.totalorder %s15, 7
    %p278 = por %p276, %p277
    %p279 = scmp.ne.s32.totalorder %s271, %s274
    %p280 = scmp.eq.s32.totalorder %s15, 0
    %p281 = por %p279, %p280
    %p282 = scmp.ne.s32.totalorder %s271, %s274
    %p283 = scmp.eq.s32.totalorder %s20, 7
    %p284 = por %p282, %p283
    %p285 = scmp.ne.s32.totalorder %s274, %s275
    %p286 = scmp.eq.s32.totalorder %s20, 0
    %p287 = por %p285, %p286
    %p288 = scmp.ne.s32.totalorder %s274, %s275
    %p289 = scmp.eq.s32.totalorder %s21, 7
    %p290 = por %p288, %p289
    %p292 = scmp.ne.s32.totalorder %s275, %s291
    %p293 = scmp.eq.s32.totalorder %s21, 0
    %p294 = por %p292, %p293
    %s295 = ssub.s32 %s22, %s48
    %s296 = ssub.s32 %s23, %s44
    %s297 = sor.u32 %s295, %s296
    %s298 = ssub.s32 %s24, %s40
    %s299 = sor.u32 %s297, %s298
    %p300 = scmp.eq.s32.totalorder %s299, 0
    %s302 = sadd.s32 %s301, 1
    %s303 = scalar_select %p300, %s301, %s302
    %p306 = pneg %p300
    %p307 = scmp.eq.s32.totalorder %s15, 7
    %p308 = por %p306, %p307
    %p309 = scmp.ne.s32.totalorder %s301, %s304
    %p310 = scmp.eq.s32.totalorder %s15, 0
    %p311 = por %p309, %p310
    %p312 = scmp.ne.s32.totalorder %s301, %s304
    %p313 = scmp.eq.s32.totalorder %s20, 7
    %p314 = por %p312, %p313
    %p315 = scmp.ne.s32.totalorder %s304, %s305
    %p316 = scmp.eq.s32.totalorder %s20, 0
    %p317 = por %p315, %p316
    %p318 = scmp.ne.s32.totalorder %s304, %s305
    %p319 = scmp.eq.s32.totalorder %s21, 7
    %p320 = por %p318, %p319
    %p322 = scmp.ne.s32.totalorder %s305, %s321
    %p323 = scmp.eq.s32.totalorder %s21, 0
    %p324 = por %p322, %p323
    %p325 = scmp.le.s32.totalorder 1, %s15
    %p326 = scmp.lt.s32.totalorder %s15, 9
    %p327 = pnand %p325, %p326
    %p328 = pneg %p327
    // Predicated region
    $region9: #{rope_self_attention.4} parent=5 // pred_check
      _
    $region10: #{rope_self_attention.4} parent=5 // pred_check_branch
      %330 = sbr.rel (%p327) target = $region12
    $region11: #{rope_self_attention.4} parent=5 // pred_region
      %s331 = ssub.s32 %s15, 1
      // Predicated region
      $region13: #{rope_self_attention.4} parent=11 // pred_check
        %p332 = pneg %p157
      $region14: #{rope_self_attention.4} parent=11 // pred_check_branch
        %334 = sbr.rel (%p332) target = $region16
      $region15: #{rope_self_attention.4} parent=11 // pred_region
        %p335 = scmp.lt.s32.totalorder %s28, 0
        %s336 = scalar_select %p335, %s28, 0
        %s337 = smul.addr %s336, 8
        %s338 = scalar_lea.vmem %s3, %s337
      $region16: #{rope_self_attention.4} parent=11 // pred_fallthru
        _
      // Predicated region
      $region17: #{rope_self_attention.4} parent=11 // pred_check
        %p339 = pneg %p183
      $region18: #{rope_self_attention.4} parent=11 // pred_check_branch
        %341 = sbr.rel (%p339) target = $region20
      $region19: #{rope_self_attention.4} parent=11 // pred_region
        %p342 = scmp.lt.s32.totalorder %s28, 0
        %s343 = scalar_select %p342, %s28, 0
        %s344 = smul.addr %s343, 8
        %s345 = scalar_lea.vmem %s4, %s344
      $region20: #{rope_self_attention.4} parent=11 // pred_fallthru
        _
      // Predicated region
      $region21: #{rope_self_attention.4} parent=11 // pred_check
        %p346 = pneg %p209
      $region22: #{rope_self_attention.4} parent=11 // pred_check_branch
        %348 = sbr.rel (%p346) target = $region24
      $region23: #{rope_self_attention.4} parent=11 // pred_region
        %p349 = scmp.lt.s32.totalorder %s28, 0
        %s350 = scalar_select %p349, %s28, 0
        %s351 = smul.addr %s350, 8
        %s352 = scalar_lea.vmem %s5, %s351
      $region24: #{rope_self_attention.4} parent=11 // pred_fallthru
        _
      // Predicated region
      $region25: #{rope_self_attention.4} parent=11 // pred_check
        %p353 = pneg %p235
      $region26: #{rope_self_attention.4} parent=11 // pred_check_branch
        %355 = sbr.rel (%p353) target = $region28
      $region27: #{rope_self_attention.4} parent=11 // pred_region
        %p356 = scmp.lt.s32.totalorder %s29, 0
        %s357 = scalar_select %p356, %s29, 0
        %s358 = smul.addr %s357, 8
        %s359 = scalar_lea.vmem %s6, %s358
      $region28: #{rope_self_attention.4} parent=11 // pred_fallthru
        _
      // Predicated region
      $region29: #{rope_self_attention.4} parent=11 // pred_check
        %p360 = pneg %p261
      $region30: #{rope_self_attention.4} parent=11 // pred_check_branch
        %362 = sbr.rel (%p360) target = $region32
      $region31: #{rope_self_attention.4} parent=11 // pred_region
        %p363 = scmp.lt.s32.totalorder %s29, 0
        %s364 = scalar_select %p363, %s29, 0
        %s365 = smul.addr %s364, 8
        %s366 = scalar_lea.vmem %s7, %s365
      $region32: #{rope_self_attention.4} parent=11 // pred_fallthru
        _
      // Predicated region
      $region33: #{rope_self_attention.4} parent=11 // pred_check
        %p367 = pneg %p287
      $region34: #{rope_self_attention.4} parent=11 // pred_check_branch
        %369 = sbr.rel (%p367) target = $region36
      $region35: #{rope_self_attention.4} parent=11 // pred_region
        %p370 = scmp.lt.s32.totalorder %s29, 0
        %s371 = scalar_select %p370, %s29, 0
        %s372 = smul.addr %s371, 8
        %s373 = scalar_lea.vmem %s8, %s372
      $region36: #{rope_self_attention.4} parent=11 // pred_fallthru
        _
    $region12: #{rope_self_attention.4} parent=5 // pred_fallthru
      _
    %p374 = scmp.lt.s32.totalorder %s15, 8
    // Predicated region
    $region37: #{rope_self_attention.4} parent=5 // pred_check
      %p375 = pneg %p374
    $region38: #{rope_self_attention.4} parent=5 // pred_check_branch
      %377 = sbr.rel (%p375) target = $region40
    $region39: #{rope_self_attention.4} parent=5 // pred_region
      // Predicated region
      $region41: #{rope_self_attention.4} parent=39 // pred_check
        %p378 = pneg %p65
      $region42: #{rope_self_attention.4} parent=39 // pred_check_branch
        %380 = sbr.rel (%p378) target = $region44
      $region43: #{rope_self_attention.4} parent=39 // pred_region
        %p381 = scmp.lt.s32.totalorder %s22, 1
        %s382 = scalar_select %p381, %s22, 1
        %p383 = scmp.lt.s32.totalorder %s23, 3
        %s384 = scalar_select %p383, %s23, 3
        %p385 = scmp.lt.s32.totalorder %s24, 0
        %s386 = scalar_select %p385, %s24, 0
        %s387 = sadd.s32 %s386, %s384
        %s388 = smul.addr %s382, 4
        %s389 = sadd.s32 %s387, %s388
        %s390 = smul.addr %s389, 4
        %s391 = scalar_lea.vmem %s0, %s390
      $region44: #{rope_self_attention.4} parent=39 // pred_fallthru
        _
      // Predicated region
      $region45: #{rope_self_attention.4} parent=39 // pred_check
        %p392 = pneg %p95
      $region46: #{rope_self_attention.4} parent=39 // pred_check_branch
        %394 = sbr.rel (%p392) target = $region48
      $region47: #{rope_self_attention.4} parent=39 // pred_region
        %p395 = scmp.lt.s32.totalorder %s22, 1
        %s396 = scalar_select %p395, %s22, 1
        %p397 = scmp.lt.s32.totalorder %s23, 3
        %s398 = scalar_select %p397, %s23, 3
        %p399 = scmp.lt.s32.totalorder %s25, 0
        %s400 = scalar_select %p399, %s25, 0
        %s401 = sadd.s32 %s400, %s398
        %s402 = smul.addr %s396, 4
        %s403 = sadd.s32 %s401, %s402
        %s404 = smul.addr %s403, 4
        %s405 = scalar_lea.vmem %s1, %s404
      $region48: #{rope_self_attention.4} parent=39 // pred_fallthru
        _
      // Predicated region
      $region49: #{rope_self_attention.4} parent=39 // pred_check
        %p406 = pneg %p125
      $region50: #{rope_self_attention.4} parent=39 // pred_check_branch
        %408 = sbr.rel (%p406) target = $region52
      $region51: #{rope_self_attention.4} parent=39 // pred_region
        %p409 = scmp.lt.s32.totalorder %s22, 1
        %s410 = scalar_select %p409, %s22, 1
        %p411 = scmp.lt.s32.totalorder %s23, 3
        %s412 = scalar_select %p411, %s23, 3
        %p413 = scmp.lt.s32.totalorder %s25, 0
        %s414 = scalar_select %p413, %s25, 0
        %s415 = sadd.s32 %s414, %s412
        %s416 = smul.addr %s410, 4
        %s417 = sadd.s32 %s415, %s416
        %s418 = smul.addr %s417, 4
        %s419 = scalar_lea.vmem %s2, %s418
      $region52: #{rope_self_attention.4} parent=39 // pred_fallthru
        _
    $region40: #{rope_self_attention.4} parent=5 // pred_fallthru
      _
    %p420 = scmp.le.s32.totalorder 1, %s15
    %p421 = scmp.lt.s32.totalorder %s15, 9
    %p422 = pnand %p420, %p421
    %p423 = pneg %p422
    // Predicated region
    $region53: #{rope_self_attention.4} parent=5 // pred_check
      _
    $region54: #{rope_self_attention.4} parent=5 // pred_check_branch
      %425 = sbr.rel (%p422) target = $region56
    $region55: #{rope_self_attention.4} parent=5 // pred_region
      %s426 = ssub.s32 %s15, 1
      %p427 = scmp.lt.s32.totalorder %s26, 1
      %s428 = scalar_select %p427, %s26, 1
      %p429 = scmp.lt.s32.totalorder %s27, 3
      %s430 = scalar_select %p429, %s27, 3
      %p431 = scmp.lt.s32.totalorder %s28, 0
      %s432 = scalar_select %p431, %s28, 0
      %s433 = sadd.s32 %s432, %s430
      %s434 = smul.addr %s428, 4
      %s435 = sadd.s32 %s433, %s434
      %s436 = smul.addr %s435, 4
      %s437 = scalar_lea.vmem %s0, %s436
      %p438 = pneg %p71
      %p439 = pneg %p68
      %p440 = scmp.lt.s32.totalorder %s26, 1
      %s441 = scalar_select %p440, %s26, 1
      %p442 = scmp.lt.s32.totalorder %s27, 3
      %s443 = scalar_select %p442, %s27, 3
      %p444 = scmp.lt.s32.totalorder %s29, 0
      %s445 = scalar_select %p444, %s29, 0
      %s446 = sadd.s32 %s445, %s443
      %s447 = smul.addr %s441, 4
      %s448 = sadd.s32 %s446, %s447
      %s449 = smul.addr %s448, 4
      %s450 = scalar_lea.vmem %s1, %s449
      %p451 = pneg %p101
      %p452 = pneg %p98
      %p453 = scmp.lt.s32.totalorder %s26, 1
      %s454 = scalar_select %p453, %s26, 1
      %p455 = scmp.lt.s32.totalorder %s27, 3
      %s456 = scalar_select %p455, %s27, 3
      %p457 = scmp.lt.s32.totalorder %s29, 0
      %s458 = scalar_select %p457, %s29, 0
      %s459 = sadd.s32 %s458, %s456
      %s460 = smul.addr %s454, 4
      %s461 = sadd.s32 %s459, %s460
      %s462 = smul.addr %s461, 4
      %s463 = scalar_lea.vmem %s2, %s462
      %p464 = pneg %p131
      %p465 = pneg %p128
      %p466 = scmp.lt.s32.totalorder %s28, 0
      %s467 = scalar_select %p466, %s28, 0
      %s468 = smul.addr %s467, 8
      %s469 = scalar_lea.vmem %s3, %s468
      %p470 = pneg %p157
      %p471 = pneg %p154
      %p472 = scmp.lt.s32.totalorder %s28, 0
      %s473 = scalar_select %p472, %s28, 0
      %s474 = smul.addr %s473, 8
      %s475 = scalar_lea.vmem %s4, %s474
      %p476 = pneg %p183
      %p477 = pneg %p180
      %p478 = scmp.lt.s32.totalorder %s28, 0
      %s479 = scalar_select %p478, %s28, 0
      %s480 = smul.addr %s479, 8
      %s481 = scalar_lea.vmem %s5, %s480
      %p482 = pneg %p209
      %p483 = pneg %p206
      %p484 = scmp.lt.s32.totalorder %s29, 0
      %s485 = scalar_select %p484, %s29, 0
      %s486 = smul.addr %s485, 8
      %s487 = scalar_lea.vmem %s6, %s486
      %p488 = pneg %p235
      %p489 = pneg %p232
      %p490 = scmp.lt.s32.totalorder %s29, 0
      %s491 = scalar_select %p490, %s29, 0
      %s492 = smul.addr %s491, 8
      %s493 = scalar_lea.vmem %s7, %s492
      %p494 = pneg %p261
      %p495 = pneg %p258
      %p496 = scmp.lt.s32.totalorder %s29, 0
      %s497 = scalar_select %p496, %s29, 0
      %s498 = smul.addr %s497, 8
      %s499 = scalar_lea.vmem %s8, %s498
      %p500 = pneg %p287
      %p501 = pneg %p284
      %p502 = pneg %p317
      %p503 = pneg %p314
      %p504 = scmp.lt.s32.totalorder %s26, 1
      %s505 = scalar_select %p504, %s26, 1
      %p506 = scmp.lt.s32.totalorder %s27, 3
      %s507 = scalar_select %p506, %s27, 3
      %p508 = scmp.lt.s32.totalorder %s28, 0
      %s509 = scalar_select %p508, %s28, 0
      %s510 = sadd.s32 %s509, %s507
      %s511 = smul.addr %s505, 4
      %s512 = sadd.s32 %s510, %s511
      %s513 = smul.addr %s512, 4
      %s514 = scalar_lea.vmem %s9, %s513
      %p515 = scmp.lt.s32.totalorder %s26, 1
      %s516 = scalar_select %p515, %s26, 1
      %p517 = scmp.lt.s32.totalorder %s27, 3
      %s518 = scalar_select %p517, %s27, 3
      %p519 = scmp.lt.s32.totalorder %s28, 0
      %s520 = scalar_select %p519, %s28, 0
      %s521 = sadd.s32 %s520, %s518
      %s522 = smul.addr %s516, 4
      %s523 = sadd.s32 %s521, %s522
      %s524 = smul.addr %s523, 4
      %s525 = scalar_lea.vmem %s0, %s524
      %p526 = scmp.lt.s32.totalorder %s26, 1
      %s527 = scalar_select %p526, %s26, 1
      %p528 = scmp.lt.s32.totalorder %s27, 3
      %s529 = scalar_select %p528, %s27, 3
      %p530 = scmp.lt.s32.totalorder %s29, 0
      %s531 = scalar_select %p530, %s29, 0
      %s532 = sadd.s32 %s531, %s529
      %s533 = smul.addr %s527, 4
      %s534 = sadd.s32 %s532, %s533
      %s535 = smul.addr %s534, 4
      %s536 = scalar_lea.vmem %s1, %s535
      %p537 = scmp.lt.s32.totalorder %s26, 1
      %s538 = scalar_select %p537, %s26, 1
      %p539 = scmp.lt.s32.totalorder %s27, 3
      %s540 = scalar_select %p539, %s27, 3
      %p541 = scmp.lt.s32.totalorder %s29, 0
      %s542 = scalar_select %p541, %s29, 0
      %s543 = sadd.s32 %s542, %s540
      %s544 = smul.addr %s538, 4
      %s545 = sadd.s32 %s543, %s544
      %s546 = smul.addr %s545, 4
      %s547 = scalar_lea.vmem %s2, %s546
      %p548 = scmp.lt.s32.totalorder %s28, 0
      %s549 = scalar_select %p548, %s28, 0
      %s550 = smul.addr %s549, 8
      %s551 = scalar_lea.vmem %s3, %s550
      %p552 = scmp.lt.s32.totalorder %s28, 0
      %s553 = scalar_select %p552, %s28, 0
      %s554 = smul.addr %s553, 8
      %s555 = scalar_lea.vmem %s4, %s554
      %p556 = scmp.lt.s32.totalorder %s28, 0
      %s557 = scalar_select %p556, %s28, 0
      %s558 = smul.addr %s557, 8
      %s559 = scalar_lea.vmem %s5, %s558
      %p560 = scmp.lt.s32.totalorder %s29, 0
      %s561 = scalar_select %p560, %s29, 0
      %s562 = smul.addr %s561, 8
      %s563 = scalar_lea.vmem %s6, %s562
      %p564 = scmp.lt.s32.totalorder %s29, 0
      %s565 = scalar_select %p564, %s29, 0
      %s566 = smul.addr %s565, 8
      %s567 = scalar_lea.vmem %s7, %s566
      %p568 = scmp.lt.s32.totalorder %s29, 0
      %s569 = scalar_select %p568, %s29, 0
      %s570 = smul.addr %s569, 8
      %s571 = scalar_lea.vmem %s8, %s570
      %p572 = scmp.lt.s32.totalorder %s26, 1
      %s573 = scalar_select %p572, %s26, 1
      %p574 = scmp.lt.s32.totalorder %s27, 3
      %s575 = scalar_select %p574, %s27, 3
      %p576 = scmp.lt.s32.totalorder %s28, 0
      %s577 = scalar_select %p576, %s28, 0
      %s578 = sadd.s32 %s577, %s575
      %s579 = smul.addr %s573, 4
      %s580 = sadd.s32 %s578, %s579
      %s581 = smul.addr %s580, 4
      %s582 = scalar_lea.vmem %s9, %s581
      %p584 = scmp.eq.s32.totalorder %s29, 0
      // Predicated region
      $region57: #{rope_self_attention.4} parent=55 // pred_check
        %p585 = pneg %p584
      $region58: #{rope_self_attention.4} parent=55 // pred_check_branch
        %587 = sbr.rel (%p585) target = $region60
      $region59: #{rope_self_attention.4} parent=55 // pred_region
        %vm588 = vcmask 7168
        %589 = vst.msk [vmem:[#allocation2] sm:$0xff] %vm588, -inf
        %590 = vst.msk [vmem:[#allocation3] sm:$0xff] %vm588, 0.0
        %vm591 = vcmask 64512
        %592 = vst.msk [vmem:[#allocation4] sm:$0xff] %vm591, 0.0
      $region60: #{rope_self_attention.4} parent=55 // pred_fallthru
        _
      %v593 = vld [vmem:[%s525] sm:$0xf]
      %v594 = vunpack.c.l.bf16 %v593
      %v595 = vld [vmem:[%s551] sm:$0xff]
      %v596 = vld [vmem:[%s555] sm:$0xff]
      %v597 = vld [vmem:[%s559] sm:$0xff]
      %v598 = vmul.f32 %v594, %v595
      %600 = vrot.lane.b32.xlu0 %v594, 127
      %v601 = vpop.permute.xlu0 %600
      %603 = vrot.lane.b32.xlu0 %v594, 7
      %v604 = vpop.permute.xlu0 %603
      %vm606 = vcmask 56320
      %v607 = vsel %vm606, %v601, %v604
      %v608 = vmul.f32 %v607, %v596
      %v609 = vadd.f32 %v598, %v608
      %610 = vrot.lane.b32.xlu0 %v594, 121
      %v611 = vpop.permute.xlu0 %610
      %613 = vrot.lane.b32.xlu0 %v594, 1
      %v614 = vpop.permute.xlu0 %613
      %vm616 = vcmask 7168
      %v617 = vsel %vm616, %v611, %v614
      %v618 = vmul.f32 %v617, %v597
      %v619 = vadd.f32 %v609, %v618
      %v620 = vld [vmem:[%s536] sm:$0xf]
      %v621 = vunpack.c.l.bf16 %v620
      %v622 = vld [vmem:[%s563] sm:$0xff]
      %v623 = vld [vmem:[%s567] sm:$0xff]
      %v624 = vld [vmem:[%s571] sm:$0xff]
      %v625 = vmul.f32 %v621, %v622
      %627 = vrot.lane.b32.xlu0 %v621, 127
      %v628 = vpop.permute.xlu0 %627
      %630 = vrot.lane.b32.xlu0 %v621, 7
      %v631 = vpop.permute.xlu0 %630
      %v633 = vsel %vm606, %v628, %v631
      %v634 = vmul.f32 %v633, %v623
      %v635 = vadd.f32 %v625, %v634
      %636 = vrot.lane.b32.xlu0 %v621, 121
      %v637 = vpop.permute.xlu0 %636
      %639 = vrot.lane.b32.xlu0 %v621, 1
      %v640 = vpop.permute.xlu0 %639
      %v642 = vsel %vm616, %v637, %v640
      %v643 = vmul.f32 %v642, %v624
      %v644 = vadd.f32 %v635, %v643
      %v645 = vmul.f32 %v619, 0.35355338
      %v646 = vpack.c.bf16 %v645, %v645
      %v647 = vpack.c.bf16 %v644, %v644
      %vm648 = vcmask 64512
      %v650 = vsel %vm648, %v646, 0
      %v653 = vsel %vm648, %v647, 0
      %655 = vmatprep.subr.bf16.mxu0 0
      %656 = vmatpush1.bf16.xpose.msra.mxu0 %v653
      %657 = vmatprep.subr.bf16.mxu0 0
      %658 = vmatpush1.bf16.xpose.msra.mxu0 0
      %659 = vmatprep.subr.bf16.mxu0 0
      %660 = vmatpush1.bf16.xpose.msra.mxu0 0
      %661 = vmatprep.subr.bf16.mxu0 0
      %662 = vmatpush1.bf16.xpose.msra.mxu0 0
      %663 = vmatprep.subr.bf16.mxu0 0
      %664 = vmatpush1.bf16.xpose.msra.mxu0 0
      %665 = vmatprep.subr.bf16.mxu0 0
      %666 = vmatpush1.bf16.xpose.msra.mxu0 0
      %667 = vmatprep.subr.bf16.mxu0 0
      %668 = vmatpush1.bf16.xpose.msra.mxu0 0
      %669 = vmatprep.subr.bf16.mxu0 0
      %670 = vmatpush1.bf16.xpose.msra.mxu0 0
      %671 = vmatprep.subr.bf16.mxu0 0
      %672 = vmatpush1.bf16.xpose.msra.mxu0 0
      %673 = vmatprep.subr.bf16.mxu0 0
      %674 = vmatpush1.bf16.xpose.msra.mxu0 0
      %675 = vmatprep.subr.bf16.mxu0 0
      %676 = vmatpush1.bf16.xpose.msra.mxu0 0
      %677 = vmatprep.subr.bf16.mxu0 0
      %678 = vmatpush1.bf16.xpose.msra.mxu0 0
      %679 = vmatprep.subr.bf16.mxu0 0
      %680 = vmatpush1.bf16.xpose.msra.mxu0 0
      %681 = vmatprep.subr.bf16.mxu0 0
      %682 = vmatpush1.bf16.xpose.msra.mxu0 0
      %683 = vmatprep.subr.bf16.mxu0 0
      %684 = vmatpush1.bf16.xpose.msra.mxu0 0
      %685 = vmatprep.subr.bf16.mxu0 0
      %686 = vmatpush1.bf16.xpose.msra.mxu0 0
      %687 = vmatprep.mubr.bf16.mxu0 0
      %688 = vmatmul.mubr.bf16.gmra.mrb[0].mxu0 %v650
      %v689 = vpop.f32.mrb[0].mxu0
      %v690 = vadd.f32 0.0, %v689
      %v691 = vpop.f32.mrb[0].mxu0
      %v692 = vpop.f32.mrb[0].mxu0
      %v693 = vpop.f32.mrb[0].mxu0
      %694 = vdwg.mxu0
      %v695 = vld [vmem:[#allocation2] sm:$0xff]
      %v696 = vsel %vm648, %v690, -inf
      %697 = vmax.xlane.f32.xlu0 %v696
      %v698 = vpop.xlane.xlu0 %697
      %v699 = vmax.f32 %v695, %v698
      %v700 = vsub.f32 %v695, %v699
      %v701 = vmul.f32 %v700, 1.442695
      %v702 = vpow.pop %v701
      %704 = vset.pattern.permute.xlu0 0
      %705 = vperm.xlu0 %704, %v699
      %v706 = vpop.permute.xlu0 %705
      %v708 = vsub.f32 %v690, %v706
      %v709 = vmul.f32 %v708, 1.442695
      %v710 = vpow.pop %v709
      %v711 = vld [vmem:[#allocation3] sm:$0xff]
      %v712 = vmul.f32 %v702, %v711
      %v713 = vsel %vm648, %v710, 0.0
      %714 = vadd.xlane.f32.xlu0 %v713
      %v715 = vpop.xlane.xlu0 %714
      %v716 = vadd.f32 %v712, %v715
      %717 = vst.msk [vmem:[#allocation3] sm:$0xff] %vm616, %v716
      %v718 = vpack.c.bf16 %v710, %v710
      %v719 = vld [vmem:[%s547] sm:$0xf]
      %v721 = vsel %vm648, %v718, 0
      %vm723 = vcmask 1043456
      %v725 = vsel %vm723, %v719, 0
      %727 = vmatprep.subr.bf16.mxu0 0
      %728 = vmatpush1.bf16.msra.mxu0 %v725
      %729 = vmatprep.subr.bf16.mxu0 0
      %730 = vmatpush1.bf16.msra.mxu0 0
      %731 = vmatprep.subr.bf16.mxu0 0
      %732 = vmatpush1.bf16.msra.mxu0 0
      %733 = vmatprep.subr.bf16.mxu0 0
      %734 = vmatpush1.bf16.msra.mxu0 0
      %735 = vmatprep.subr.bf16.mxu0 0
      %736 = vmatpush1.bf16.msra.mxu0 0
      %737 = vmatprep.subr.bf16.mxu0 0
      %738 = vmatpush1.bf16.msra.mxu0 0
      %739 = vmatprep.subr.bf16.mxu0 0
      %740 = vmatpush1.bf16.msra.mxu0 0
      %741 = vmatprep.subr.bf16.mxu0 0
      %742 = vmatpush1.bf16.msra.mxu0 0
      %743 = vmatprep.subr.bf16.mxu0 0
      %744 = vmatpush1.bf16.msra.mxu0 0
      %745 = vmatprep.subr.bf16.mxu0 0
      %746 = vmatpush1.bf16.msra.mxu0 0
      %747 = vmatprep.subr.bf16.mxu0 0
      %748 = vmatpush1.bf16.msra.mxu0 0
      %749 = vmatprep.subr.bf16.mxu0 0
      %750 = vmatpush1.bf16.msra.mxu0 0
      %751 = vmatprep.subr.bf16.mxu0 0
      %752 = vmatpush1.bf16.msra.mxu0 0
      %753 = vmatprep.subr.bf16.mxu0 0
      %754 = vmatpush1.bf16.msra.mxu0 0
      %755 = vmatprep.subr.bf16.mxu0 0
      %756 = vmatpush1.bf16.msra.mxu0 0
      %757 = vmatprep.subr.bf16.mxu0 0
      %758 = vmatpush1.bf16.msra.mxu0 0
      %759 = vmatprep.mubr.bf16.mxu0 0
      %760 = vmatmul.mubr.bf16.gmra.mrb[0].mxu0 %v721
      %v761 = vpop.f32.mrb[0].mxu0
      %v762 = vadd.f32 0.0, %v761
      %v763 = vpop.f32.mrb[0].mxu0
      %v764 = vpop.f32.mrb[0].mxu0
      %v765 = vpop.f32.mrb[0].mxu0
      %766 = vdwg.mxu0
      %v767 = vld [vmem:[#allocation4] sm:$0xff]
      %769 = vset.pattern.permute.xlu0 0
      %770 = vperm.xlu0 %769, %v702
      %v771 = vpop.permute.xlu0 %770
      %v773 = vmul.f32 %v771, %v767
      %v774 = vadd.f32 %v773, %v762
      %775 = vst.msk [vmem:[#allocation4] sm:$0xff] %vm648, %v774
      %776 = vst.msk [vmem:[#allocation2] sm:$0xff] %vm616, %v699
      // Predicated region
      $region61: #{rope_self_attention.4} parent=55 // pred_check
        %p777 = pneg %p584
      $region62: #{rope_self_attention.4} parent=55 // pred_check_branch
        %779 = sbr.rel (%p777) target = $region64
      $region63: #{rope_self_attention.4} parent=55 // pred_region
        %v780 = vld [vmem:[#allocation4] sm:$0xff]
        %v781 = vld [vmem:[#allocation3] sm:$0xff]
        %783 = vset.pattern.permute.xlu0 0
        %784 = vperm.xlu0 %783, %v781
        %v785 = vpop.permute.xlu0 %784
        %v787 = vrcp.pop %v785
        %v788 = vmul.f32 %v780, %v787
        %v789 = vpack.c.bf16 %v788, %v788
        %vm790 = vcmask 60416
        %791 = vst.msk [vmem:[%s582] sm:$0xf] %vm790, %v789
      $region64: #{rope_self_attention.4} parent=55 // pred_fallthru
        _
      %p792 = scmp.lt.s32.totalorder %s26, 1
      %s793 = scalar_select %p792, %s26, 1
      %p794 = scmp.lt.s32.totalorder %s27, 3
      %s795 = scalar_select %p794, %s27, 3
      %p796 = scmp.lt.s32.totalorder %s28, 0
      %s797 = scalar_select %p796, %s28, 0
      %s798 = sadd.s32 %s797, %s795
      %s799 = smul.addr %s793, 4
      %s800 = sadd.s32 %s798, %s799
      %s801 = smul.addr %s800, 4
      %s802 = scalar_lea.vmem %s9, %s801
      // Predicated region
      $region65: #{rope_self_attention.4} parent=55 // pred_check
        %p803 = pneg %p314
      $region66: #{rope_self_attention.4} parent=55 // pred_check_branch
        %805 = sbr.rel (%p803) target = $region68
      $region67: #{rope_self_attention.4} parent=55 // pred_region
        _
      $region68: #{rope_self_attention.4} parent=55 // pred_fallthru
        _
    $region56: #{rope_self_attention.4} parent=5 // pred_fallthru
      _
    %p806 = scmp.le.s32.totalorder 2, %s15
    // Predicated region
    $region69: #{rope_self_attention.4} parent=5 // pred_check
      %p807 = pneg %p806
    $region70: #{rope_self_attention.4} parent=5 // pred_check_branch
      %809 = sbr.rel (%p807) target = $region72
    $region71: #{rope_self_attention.4} parent=5 // pred_region
      %s810 = ssub.s32 %s15, 2
      // Predicated region
      $region73: #{rope_self_attention.4} parent=71 // pred_check
        %p811 = pneg %p320
      $region74: #{rope_self_attention.4} parent=71 // pred_check_branch
        %813 = sbr.rel (%p811) target = $region76
      $region75: #{rope_self_attention.4} parent=71 // pred_region
        %p814 = scmp.lt.s32.totalorder %s30, 1
        %s815 = scalar_select %p814, %s30, 1
        %p816 = scmp.lt.s32.totalorder %s31, 3
        %s817 = scalar_select %p816, %s31, 3
        %p818 = scmp.lt.s32.totalorder %s32, 0
        %s819 = scalar_select %p818, %s32, 0
        %s820 = sadd.s32 %s819, %s817
        %s821 = smul.addr %s815, 4
        %s822 = sadd.s32 %s820, %s821
        %s823 = smul.addr %s822, 4
        %s824 = scalar_lea.vmem %s9, %s823
      $region76: #{rope_self_attention.4} parent=71 // pred_fallthru
        _
    $region72: #{rope_self_attention.4} parent=5 // pred_fallthru
      _
  $region6: #{rope_self_attention.4} parent=0 // loop_footer
    %s19 = sadd.s32 1, %s15
  $region7: #{rope_self_attention.4} parent=0 // loop_footer_branch
    %14 = sbr.rel target = $region3
  $region8: #{rope_self_attention.4} parent=0 // loop_exit
    _

</llo_original>
